<compile_context>
chip_gen: v6e
topology: v6e:2x2x1
jax: 0.10.0
libtpu: 0.0.40
codegen_flags: <defaults>
</compile_context>

<pallas_src>
import functools

import jax
import jax.numpy as jnp
from jax.experimental import pallas as pl
from jax.experimental.pallas import tpu as pltpu


def _leaky_relu(v, slope=0.01):
    return jnp.where(v > 0, v, slope * v)


def _round_up(n, m):
    return ((n + m - 1) // m) * m


# ---------------------------------------------------------------------------
# Kernel
# ---------------------------------------------------------------------------
def gru_policy_kernel(
    x_ref, h_ref,
    w1_ref, b1_ref,
    w2_ref, b2_ref,
    wg_ref, bg_ref,
    w3_ref, b3_ref,
    out_ref, hnew_ref,
    hx_ref,                      # VMEM scratch (block_b, 2H) bf16
):
    bf = jnp.bfloat16
    H = hnew_ref.shape[-1]

    x = x_ref[...].astype(bf)            # (TB, input_dim)  cast in-kernel (VPU)
    h_prev = h_ref[...]                  # (TB, H) f32

    # fc1 + leaky_relu
    h1 = _leaky_relu(
        jnp.dot(x, w1_ref[...], preferred_element_type=jnp.float32) + b1_ref[...]
    )
    # fc2 + leaky_relu
    h2 = _leaky_relu(
        jnp.dot(h1.astype(bf), w2_ref[...], preferred_element_type=jnp.float32)
        + b2_ref[...]
    )

    # Fused GRUCell: build hx = [h2 | h_prev] with two lane-aligned column
    # stores into scratch, then one K=2H matmul producing [r | z | i_n | h_n].
    hx_ref[:, :H] = h2.astype(bf)
    hx_ref[:, H:] = h_prev.astype(bf)    # bf16 recurrent-path cast (see precision note)
    g = jnp.dot(hx_ref[...], wg_ref[...], preferred_element_type=jnp.float32) + bg_ref[...]

    r = jax.nn.sigmoid(g[:, :H])
    z = jax.nn.sigmoid(g[:, H:2 * H])
    n = jnp.tanh(g[:, 2 * H:3 * H] + r * g[:, 3 * H:])
    h_new = (1.0 - z) * n + z * h_prev
    hnew_ref[...] = h_new                # f32 state, written in place over h_prev's buffer

    # fc3 + leaky_relu -> bf16 lane-dense padded output (sliced/cast outside)
    out_ref[...] = _leaky_relu(
        jnp.dot(h_new.astype(bf), w3_ref[...], preferred_element_type=jnp.float32)
        + b3_ref[...]
    ).astype(out_ref.dtype)


# ---------------------------------------------------------------------------
# Wrapper
# ---------------------------------------------------------------------------
@functools.partial(jax.jit, static_argnames=("out_dim", "block_b"),
                   donate_argnames=("h_prev",))
def gru_policy_forward(x, h_prev, kparams, *, out_dim, block_b=128):
    """x: (B, input_dim) f32; h_prev: (Bp, H) f32 with Bp a multiple of block_b.

    Returns (out (B, out_dim) f32, h_new (Bp, H) f32).  h_new stays in the
    padded (Bp, H) layout so it can be fed straight back in the next call; it
    reuses h_prev's buffer (input_output_aliases + donation).  Rows B..Bp of
    h_new are nonzero (bias-driven) but are never read by real rows.
    """
    B, input_dim = x.shape
    Bp, H = h_prev.shape
    assert Bp % block_b == 0 and Bp >= B, (B, Bp, block_b)

    w1, b1 = kparams["w1"], kparams["b1"]
    w2, b2 = kparams["w2"], kparams["b2"]
    wg, bg = kparams["wg"], kparams["bg"]
    w3, b3 = kparams["w3"], kparams["b3"]
    out_pad = w3.shape[1]

    if Bp != B:
        # Row-pad x only; feature dim stays unpadded (block last dim == full dim).
        x = jnp.zeros((Bp, input_dim), x.dtype).at[:B].set(x)

    grid = (Bp // block_b,)

    def batch_map(i):
        return (i, 0)

    def fixed_map(i):          # weights/biases: same block every step -> VMEM resident
        return (0, 0)

    out_p, h_new = pl.pallas_call(
        gru_policy_kernel,
        out_shape=(
            jax.ShapeDtypeStruct((Bp, out_pad), jnp.bfloat16),
            jax.ShapeDtypeStruct((Bp, H), jnp.float32),
        ),
        grid=grid,
        in_specs=[
            pl.BlockSpec((block_b, input_dim), batch_map),
            pl.BlockSpec((block_b, H), batch_map),
            pl.BlockSpec(w1.shape, fixed_map),
            pl.BlockSpec(b1.shape, fixed_map),
            pl.BlockSpec(w2.shape, fixed_map),
            pl.BlockSpec(b2.shape, fixed_map),
            pl.BlockSpec(wg.shape, fixed_map),
            pl.BlockSpec(bg.shape, fixed_map),
            pl.BlockSpec(w3.shape, fixed_map),
            pl.BlockSpec(b3.shape, fixed_map),
        ],
        out_specs=(
            pl.BlockSpec((block_b, out_pad), batch_map),
            pl.BlockSpec((block_b, H), batch_map),
        ),
        scratch_shapes=[pltpu.VMEM((block_b, 2 * H), jnp.bfloat16)],
        input_output_aliases={1: 1},     # h_prev buffer reused for h_new
        compiler_params=pltpu.CompilerParams(
            dimension_semantics=("parallel",),
        ),
    )(x, h_prev, w1, b1, w2, b2, wg, bg, w3, b3)

    return out_p[:B, :out_dim].astype(jnp.float32), h_new


# ---------------------------------------------------------------------------
# Parameter construction
# ---------------------------------------------------------------------------
def init_params(key, input_dim, hidden_dim, out_dim):
    """PyTorch-layout f32 parameters (Linear: (out,in), GRUCell: (3H,H), gate order r,z,n)."""
    ks = jax.random.split(key, 10)

    def unif(k, shape, fan_in):
        bound = 1.0 / jnp.sqrt(jnp.asarray(fan_in, jnp.float32))
        return jax.random.uniform(k, shape, jnp.float32, -bound, bound)

    H = hidden_dim
    return {
        "w1": unif(ks[0], (H, input_dim), input_dim),
        "b1": unif(ks[1], (H,), input_dim),
        "w2": unif(ks[2], (H, H), H),
        "b2": unif(ks[3], (H,), H),
        "w_ih": unif(ks[4], (3 * H, H), H),
        "b_ih": unif(ks[5], (3 * H,), H),
        "w_hh": unif(ks[6], (3 * H, H), H),
        "b_hh": unif(ks[7], (3 * H,), H),
        "w3": unif(ks[8], (out_dim, H), H),
        "b3": unif(ks[9], (out_dim,), H),
    }


def prepare_params(p, *, lane_pad=128):
    """Transpose, fuse the GRU weights/biases, pad fc3 to lane-dense width, cast to bf16."""
    H = p["w2"].shape[0]
    out_dim = p["w3"].shape[0]
    out_pad = _round_up(out_dim, lane_pad)
    bf = jnp.bfloat16

    w1 = p["w1"].T                      # (input_dim, H) — no K padding
    b1 = p["b1"].reshape(1, H)
    w2 = p["w2"].T
    b2 = p["b2"].reshape(1, H)

    # Fused GRU weight (2H, 4H): columns = [r | z | i_n | h_n]
    wg = jnp.zeros((2 * H, 4 * H), jnp.float32)
    wg = wg.at[:H, :2 * H].set(p["w_ih"][:2 * H].T)          # x -> r,z
    wg = wg.at[H:, :2 * H].set(p["w_hh"][:2 * H].T)          # h -> r,z
    wg = wg.at[:H, 2 * H:3 * H].set(p["w_ih"][2 * H:].T)     # x -> i_n
    wg = wg.at[H:, 3 * H:].set(p["w_hh"][2 * H:].T)          # h -> h_n
    bg = jnp.concatenate([
        p["b_ih"][:2 * H] + p["b_hh"][:2 * H],                # pre-added r/z biases
        p["b_ih"][2 * H:],                                    # b_in
        p["b_hh"][2 * H:],                                    # b_hn
    ]).reshape(1, 4 * H)

    w3 = jnp.zeros((H, out_pad), jnp.float32).at[:, :out_dim].set(p["w3"].T)
    b3 = jnp.zeros((1, out_pad), jnp.float32).at[:, :out_dim].set(
        p["b3"].reshape(1, out_dim))

    return {
        "w1": w1.astype(bf), "b1": b1,
        "w2": w2.astype(bf), "b2": b2,
        "wg": wg.astype(bf), "bg": bg,
        "w3": w3.astype(bf), "b3": b3,
    }


# ---------------------------------------------------------------------------
# References
# ---------------------------------------------------------------------------
def reference_forward(x, h_prev, p):
    """Pure-f32 reference mirroring the PyTorch module exactly."""
    H = h_prev.shape[-1]
    h1 = _leaky_relu(x @ p["w1"].T + p["b1"])
    h2 = _leaky_relu(h1 @ p["w2"].T + p["b2"])
    gi = h2 @ p["w_ih"].T + p["b_ih"]
    gh = h_prev @ p["w_hh"].T + p["b_hh"]
    r = jax.nn.sigmoid(gi[:, :H] + gh[:, :H])
    z = jax.nn.sigmoid(gi[:, H:2 * H] + gh[:, H:2 * H])
    n = jnp.tanh(gi[:, 2 * H:] + r * gh[:, 2 * H:])
    h_new = (1.0 - z) * n + z * h_prev
    out = _leaky_relu(h_new @ p["w3"].T + p["b3"])
    return out, h_new


def reference_forward_matched(x, h_prev, kp, hidden, out_dim):
    """Pure-JAX model with the SAME bf16-input / f32-accumulate policy as the kernel."""
    bf = jnp.bfloat16
    H = hidden
    h1 = _leaky_relu(jnp.dot(x.astype(bf), kp["w1"],
                             preferred_element_type=jnp.float32) + kp["b1"])
    h2 = _leaky_relu(jnp.dot(h1.astype(bf), kp["w2"],
                             preferred_element_type=jnp.float32) + kp["b2"])
    hx = jnp.concatenate([h2.astype(bf), h_prev.astype(bf)], axis=-1)
    g = jnp.dot(hx, kp["wg"], preferred_element_type=jnp.float32) + kp["bg"]
    r = jax.nn.sigmoid(g[:, :H])
    z = jax.nn.sigmoid(g[:, H:2 * H])
    n = jnp.tanh(g[:, 2 * H:3 * H] + r * g[:, 3 * H:])
    h_new = (1.0 - z) * n + z * h_prev
    out = _leaky_relu(jnp.dot(h_new.astype(bf), kp["w3"],
                              preferred_element_type=jnp.float32) + kp["b3"])
    return out[:, :out_dim], h_new


# ---------------------------------------------------------------------------
# Demo / correctness check
# ---------------------------------------------------------------------------
if __name__ == "__main__":
    # hidden_dim = 128 matches the module's hard-coded self.h3 = zeros([859*2, 128]).
    # Small batch here; production (1718 rows) would pad to 1728 with block_b=864
    # so the grid stays exactly (2,).
    B, INPUT_DIM, HIDDEN_DIM, OUT_DIM = 256, 32, 128, 16
    BLOCK_B = 128            # -> grid=(2,): one tile per v7x TC, 2-step pipeline on v5e/v6e

    key = jax.random.PRNGKey(0)
    k_x, k_p = jax.random.split(key)
    x = jax.random.normal(k_x, (B, INPUT_DIM), jnp.float32)

    params = init_params(k_p, INPUT_DIM, HIDDEN_DIM, OUT_DIM)
    kparams = prepare_params(params, lane_pad=128)

    Bp = _round_up(B, BLOCK_B)
    # Recurrent state in padded (Bp, H) layout (mirrors stateful self.h3);
    # it is DONATED to the call and updated in place.
    h0 = jnp.zeros((Bp, HIDDEN_DIM), jnp.float32)

    out, h_new = gru_policy_forward(x, h0, kparams, out_dim=OUT_DIM, block_b=BLOCK_B)
    jax.block_until_ready((out, h_new))
    # NOTE: h0 was donated; references below use a fresh zeros state.

    h_ref0 = jnp.zeros((B, HIDDEN_DIM), jnp.float32)

    # Exactness vs a pure-JAX model using the identical precision policy
    # (the kernel's fc3 output is additionally bf16-rounded, hence 2e-2 there).
    out_m, h_m = reference_forward_matched(x, h_ref0, kparams, HIDDEN_DIM, OUT_DIM)
    assert jnp.allclose(out, out_m, atol=2e-2, rtol=2e-2)
    assert jnp.allclose(h_new[:B], h_m, atol=1e-4, rtol=1e-4)

    # Semantic fidelity vs the full-f32 PyTorch-layout reference (bf16 noise only).
    out_f, h_f = reference_forward(x, h_ref0, params)
    assert jnp.allclose(out, out_f, atol=5e-2, rtol=5e-2)
    assert jnp.allclose(h_new[:B], h_f, atol=5e-2, rtol=5e-2)

    print("KERNEL_OK")
</pallas_src>

<mosaic_0001>
module attributes {stable_mosaic.version = 11 : i64} {
  func.func @gru_policy_kernel(%arg0: i32, %arg1: memref<128x32xf32, #tpu.memory_space<vmem>>, %arg2: memref<128x128xf32, #tpu.memory_space<vmem>>, %arg3: memref<32x128xbf16, #tpu.memory_space<vmem>>, %arg4: memref<1x128xf32, #tpu.memory_space<vmem>>, %arg5: memref<128x128xbf16, #tpu.memory_space<vmem>>, %arg6: memref<1x128xf32, #tpu.memory_space<vmem>>, %arg7: memref<256x512xbf16, #tpu.memory_space<vmem>>, %arg8: memref<1x512xf32, #tpu.memory_space<vmem>>, %arg9: memref<128x128xbf16, #tpu.memory_space<vmem>>, %arg10: memref<1x128xf32, #tpu.memory_space<vmem>>, %arg11: memref<128x128xbf16, #tpu.memory_space<vmem>>, %arg12: memref<128x128xf32, #tpu.memory_space<vmem>>, %arg13: memref<128x256xbf16, #tpu.memory_space<vmem>>) attributes {dimension_semantics = [#tpu.dimension_semantics<parallel>], iteration_bounds = array<i64: 2>, scalar_prefetch = 0 : i64, scratch_operands = 1 : i64, tpu.core_type = #tpu.core_type<tc>, window_params = [{transform_indices = @transform_0, window_bounds = array<i64: 128, 32>}, {transform_indices = @transform_1, window_bounds = array<i64: 128, 128>}, {pipeline_mode = #tpu.pipeline_mode<synchronous>, transform_indices = @transform_2, window_bounds = array<i64: 32, 128>}, {pipeline_mode = #tpu.pipeline_mode<synchronous>, transform_indices = @transform_3, window_bounds = array<i64: 1, 128>}, {pipeline_mode = #tpu.pipeline_mode<synchronous>, transform_indices = @transform_4, window_bounds = array<i64: 128, 128>}, {pipeline_mode = #tpu.pipeline_mode<synchronous>, transform_indices = @transform_5, window_bounds = array<i64: 1, 128>}, {pipeline_mode = #tpu.pipeline_mode<synchronous>, transform_indices = @transform_6, window_bounds = array<i64: 256, 512>}, {pipeline_mode = #tpu.pipeline_mode<synchronous>, transform_indices = @transform_7, window_bounds = array<i64: 1, 512>}, {pipeline_mode = #tpu.pipeline_mode<synchronous>, transform_indices = @transform_8, window_bounds = array<i64: 128, 128>}, {pipeline_mode = #tpu.pipeline_mode<synchronous>, transform_indices = @transform_9, window_bounds = array<i64: 1, 128>}, {transform_indices = @transform_10, window_bounds = array<i64: 128, 128>}, {transform_indices = @transform_11, window_bounds = array<i64: 128, 128>}]} {
    %c0 = arith.constant 0 : index
    %c0_0 = arith.constant 0 : index
    %0 = vector.load %arg1[%c0, %c0_0] : memref<128x32xf32, #tpu.memory_space<vmem>>, vector<128x32xf32>
    %1 = arith.truncf %0 : vector<128x32xf32> to vector<128x32xbf16>
    %c0_1 = arith.constant 0 : index
    %c0_2 = arith.constant 0 : index
    %2 = vector.load %arg2[%c0_1, %c0_2] : memref<128x128xf32, #tpu.memory_space<vmem>>, vector<128x128xf32>
    %c0_3 = arith.constant 0 : index
    %c0_4 = arith.constant 0 : index
    %3 = vector.load %arg3[%c0_3, %c0_4] : memref<32x128xbf16, #tpu.memory_space<vmem>>, vector<32x128xbf16>
    %cst = arith.constant dense<0.000000e+00> : vector<128x128xf32>
    %4 = tpu.matmul %1, %3, %cst {dimension_numbers = #tpu.dot_dimension_numbers<[1], [0], [0], [1], [0, 0, 1, 1], [], []>} : vector<128x32xbf16>, vector<32x128xbf16>, vector<128x128xf32> -> vector<128x128xf32>
    %c0_5 = arith.constant 0 : index
    %c0_6 = arith.constant 0 : index
    %5 = vector.load %arg4[%c0_5, %c0_6] : memref<1x128xf32, #tpu.memory_space<vmem>>, vector<1x128xf32>
    %6 = vector.broadcast %5 : vector<1x128xf32> to vector<128x128xf32>
    %7 = arith.addf %4, %6 : vector<128x128xf32>
    %cst_7 = arith.constant 0.000000e+00 : f32
    %8 = vector.broadcast %cst_7 : f32 to vector<128x128xf32>
    %9 = arith.cmpf ogt, %7, %8 : vector<128x128xf32>
    %cst_8 = arith.constant 0.00999999977 : f32
    %10 = vector.broadcast %cst_8 : f32 to vector<128x128xf32>
    %11 = arith.mulf %10, %7 : vector<128x128xf32>
    %12 = arith.select %9, %7, %11 : vector<128x128xi1>, vector<128x128xf32>
    %13 = arith.truncf %12 : vector<128x128xf32> to vector<128x128xbf16>
    %c0_9 = arith.constant 0 : index
    %c0_10 = arith.constant 0 : index
    %14 = vector.load %arg5[%c0_9, %c0_10] : memref<128x128xbf16, #tpu.memory_space<vmem>>, vector<128x128xbf16>
    %cst_11 = arith.constant dense<0.000000e+00> : vector<128x128xf32>
    %15 = tpu.matmul %13, %14, %cst_11 {dimension_numbers = #tpu.dot_dimension_numbers<[1], [0], [0], [1], [0, 0, 1, 1], [], []>} : vector<128x128xbf16>, vector<128x128xbf16>, vector<128x128xf32> -> vector<128x128xf32>
    %c0_12 = arith.constant 0 : index
    %c0_13 = arith.constant 0 : index
    %16 = vector.load %arg6[%c0_12, %c0_13] : memref<1x128xf32, #tpu.memory_space<vmem>>, vector<1x128xf32>
    %17 = vector.broadcast %16 : vector<1x128xf32> to vector<128x128xf32>
    %18 = arith.addf %15, %17 : vector<128x128xf32>
    %cst_14 = arith.constant 0.000000e+00 : f32
    %19 = vector.broadcast %cst_14 : f32 to vector<128x128xf32>
    %20 = arith.cmpf ogt, %18, %19 : vector<128x128xf32>
    %cst_15 = arith.constant 0.00999999977 : f32
    %21 = vector.broadcast %cst_15 : f32 to vector<128x128xf32>
    %22 = arith.mulf %21, %18 : vector<128x128xf32>
    %23 = arith.select %20, %18, %22 : vector<128x128xi1>, vector<128x128xf32>
    %24 = arith.truncf %23 : vector<128x128xf32> to vector<128x128xbf16>
    %c0_16 = arith.constant 0 : index
    %c0_17 = arith.constant 0 : index
    %25 = vector.load %arg13[%c0_16, %c0_17] : memref<128x256xbf16, #tpu.memory_space<vmem>>, vector<128x128xbf16>
    tpu.vector_store %arg13[%c0_16, %c0_17], %24 {strides = array<i32>} : memref<128x256xbf16, #tpu.memory_space<vmem>>, vector<128x128xbf16>,
    %26 = arith.truncf %2 : vector<128x128xf32> to vector<128x128xbf16>
    %c0_18 = arith.constant 0 : index
    %c128 = arith.constant 128 : index
    %27 = vector.load %arg13[%c0_18, %c128] : memref<128x256xbf16, #tpu.memory_space<vmem>>, vector<128x128xbf16>
    tpu.vector_store %arg13[%c0_18, %c128], %26 {strides = array<i32>} : memref<128x256xbf16, #tpu.memory_space<vmem>>, vector<128x128xbf16>,
    %c0_19 = arith.constant 0 : index
    %c0_20 = arith.constant 0 : index
    %28 = vector.load %arg13[%c0_19, %c0_20] : memref<128x256xbf16, #tpu.memory_space<vmem>>, vector<128x256xbf16>
    %c0_21 = arith.constant 0 : index
    %c0_22 = arith.constant 0 : index
    %29 = vector.load %arg7[%c0_21, %c0_22] : memref<256x512xbf16, #tpu.memory_space<vmem>>, vector<256x512xbf16>
    %cst_23 = arith.constant dense<0.000000e+00> : vector<128x512xf32>
    %30 = tpu.matmul %28, %29, %cst_23 {dimension_numbers = #tpu.dot_dimension_numbers<[1], [0], [0], [1], [0, 0, 1, 1], [], []>} : vector<128x256xbf16>, vector<256x512xbf16>, vector<128x512xf32> -> vector<128x512xf32>
    %c0_24 = arith.constant 0 : index
    %c0_25 = arith.constant 0 : index
    %31 = vector.load %arg8[%c0_24, %c0_25] : memref<1x512xf32, #tpu.memory_space<vmem>>, vector<1x512xf32>
    %32 = vector.broadcast %31 : vector<1x512xf32> to vector<128x512xf32>
    %33 = arith.addf %30, %32 : vector<128x512xf32>
    %34 = vector.extract_strided_slice %33 {offsets = [0, 0], sizes = [128, 128], strides = [1, 1]} : vector<128x512xf32> to vector<128x128xf32>
    %35 = arith.negf %34 : vector<128x128xf32>
    %36 = math.exp %35 : vector<128x128xf32>
    %cst_26 = arith.constant 1.000000e+00 : f32
    %37 = vector.broadcast %cst_26 : f32 to vector<128x128xf32>
    %38 = arith.addf %37, %36 : vector<128x128xf32>
    %39 = arith.divf %37, %38 : vector<128x128xf32>
    %40 = vector.extract_strided_slice %33 {offsets = [0, 128], sizes = [128, 128], strides = [1, 1]} : vector<128x512xf32> to vector<128x128xf32>
    %41 = arith.negf %40 : vector<128x128xf32>
    %42 = math.exp %41 : vector<128x128xf32>
    %cst_27 = arith.constant 1.000000e+00 : f32
    %43 = vector.broadcast %cst_27 : f32 to vector<128x128xf32>
    %44 = arith.addf %43, %42 : vector<128x128xf32>
    %45 = arith.divf %43, %44 : vector<128x128xf32>
    %46 = vector.extract_strided_slice %33 {offsets = [0, 256], sizes = [128, 128], strides = [1, 1]} : vector<128x512xf32> to vector<128x128xf32>
    %47 = vector.extract_strided_slice %33 {offsets = [0, 384], sizes = [128, 128], strides = [1, 1]} : vector<128x512xf32> to vector<128x128xf32>
    %48 = arith.mulf %39, %47 : vector<128x128xf32>
    %49 = arith.addf %46, %48 : vector<128x128xf32>
    %50 = math.tanh %49 : vector<128x128xf32>
    %cst_28 = arith.constant 1.000000e+00 : f32
    %51 = vector.broadcast %cst_28 : f32 to vector<128x128xf32>
    %52 = arith.subf %51, %45 : vector<128x128xf32>
    %53 = arith.mulf %52, %50 : vector<128x128xf32>
    %54 = arith.mulf %45, %2 : vector<128x128xf32>
    %55 = arith.addf %53, %54 : vector<128x128xf32>
    %c0_29 = arith.constant 0 : index
    %c0_30 = arith.constant 0 : index
    %56 = vector.load %arg12[%c0_29, %c0_30] : memref<128x128xf32, #tpu.memory_space<vmem>>, vector<128x128xf32>
    tpu.vector_store %arg12[%c0_29, %c0_30], %55 {strides = array<i32>} : memref<128x128xf32, #tpu.memory_space<vmem>>, vector<128x128xf32>,
    %57 = arith.truncf %55 : vector<128x128xf32> to vector<128x128xbf16>
    %c0_31 = arith.constant 0 : index
    %c0_32 = arith.constant 0 : index
    %58 = vector.load %arg9[%c0_31, %c0_32] : memref<128x128xbf16, #tpu.memory_space<vmem>>, vector<128x128xbf16>
    %cst_33 = arith.constant dense<0.000000e+00> : vector<128x128xf32>
    %59 = tpu.matmul %57, %58, %cst_33 {dimension_numbers = #tpu.dot_dimension_numbers<[1], [0], [0], [1], [0, 0, 1, 1], [], []>} : vector<128x128xbf16>, vector<128x128xbf16>, vector<128x128xf32> -> vector<128x128xf32>
    %c0_34 = arith.constant 0 : index
    %c0_35 = arith.constant 0 : index
    %60 = vector.load %arg10[%c0_34, %c0_35] : memref<1x128xf32, #tpu.memory_space<vmem>>, vector<1x128xf32>
    %61 = vector.broadcast %60 : vector<1x128xf32> to vector<128x128xf32>
    %62 = arith.addf %59, %61 : vector<128x128xf32>
    %cst_36 = arith.constant 0.000000e+00 : f32
    %63 = vector.broadcast %cst_36 : f32 to vector<128x128xf32>
    %64 = arith.cmpf ogt, %62, %63 : vector<128x128xf32>
    %cst_37 = arith.constant 0.00999999977 : f32
    %65 = vector.broadcast %cst_37 : f32 to vector<128x128xf32>
    %66 = arith.mulf %65, %62 : vector<128x128xf32>
    %67 = arith.select %64, %62, %66 : vector<128x128xi1>, vector<128x128xf32>
    %68 = arith.truncf %67 : vector<128x128xf32> to vector<128x128xbf16>
    %c0_38 = arith.constant 0 : index
    %c0_39 = arith.constant 0 : index
    %69 = vector.load %arg11[%c0_38, %c0_39] : memref<128x128xbf16, #tpu.memory_space<vmem>>, vector<128x128xbf16>
    tpu.vector_store %arg11[%c0_38, %c0_39], %68 {strides = array<i32>} : memref<128x128xbf16, #tpu.memory_space<vmem>>, vector<128x128xbf16>,
    return
  }
  func.func @transform_0(%arg0: i32) -> (i32, i32) {
    %c0_i32 = arith.constant 0 : i32
    %c0_i32_0 = arith.constant 0 : i32
    return %arg0, %c0_i32 : i32, i32
  }
  func.func @transform_1(%arg0: i32) -> (i32, i32) {
    %c0_i32 = arith.constant 0 : i32
    %c0_i32_0 = arith.constant 0 : i32
    return %arg0, %c0_i32 : i32, i32
  }
  func.func @transform_2(%arg0: i32) -> (i32, i32) {
    %c0_i32 = arith.constant 0 : i32
    %c0_i32_0 = arith.constant 0 : i32
    %c0_i32_1 = arith.constant 0 : i32
    return %c0_i32, %c0_i32_0 : i32, i32
  }
  func.func @transform_3(%arg0: i32) -> (i32, i32) {
    %c0_i32 = arith.constant 0 : i32
    %c0_i32_0 = arith.constant 0 : i32
    %c0_i32_1 = arith.constant 0 : i32
    return %c0_i32, %c0_i32_0 : i32, i32
  }
  func.func @transform_4(%arg0: i32) -> (i32, i32) {
    %c0_i32 = arith.constant 0 : i32
    %c0_i32_0 = arith.constant 0 : i32
    %c0_i32_1 = arith.constant 0 : i32
    return %c0_i32, %c0_i32_0 : i32, i32
  }
  func.func @transform_5(%arg0: i32) -> (i32, i32) {
    %c0_i32 = arith.constant 0 : i32
    %c0_i32_0 = arith.constant 0 : i32
    %c0_i32_1 = arith.constant 0 : i32
    return %c0_i32, %c0_i32_0 : i32, i32
  }
  func.func @transform_6(%arg0: i32) -> (i32, i32) {
    %c0_i32 = arith.constant 0 : i32
    %c0_i32_0 = arith.constant 0 : i32
    %c0_i32_1 = arith.constant 0 : i32
    return %c0_i32, %c0_i32_0 : i32, i32
  }
  func.func @transform_7(%arg0: i32) -> (i32, i32) {
    %c0_i32 = arith.constant 0 : i32
    %c0_i32_0 = arith.constant 0 : i32
    %c0_i32_1 = arith.constant 0 : i32
    return %c0_i32, %c0_i32_0 : i32, i32
  }
  func.func @transform_8(%arg0: i32) -> (i32, i32) {
    %c0_i32 = arith.constant 0 : i32
    %c0_i32_0 = arith.constant 0 : i32
    %c0_i32_1 = arith.constant 0 : i32
    return %c0_i32, %c0_i32_0 : i32, i32
  }
  func.func @transform_9(%arg0: i32) -> (i32, i32) {
    %c0_i32 = arith.constant 0 : i32
    %c0_i32_0 = arith.constant 0 : i32
    %c0_i32_1 = arith.constant 0 : i32
    return %c0_i32, %c0_i32_0 : i32, i32
  }
  func.func @transform_10(%arg0: i32) -> (i32, i32) {
    %c0_i32 = arith.constant 0 : i32
    %c0_i32_0 = arith.constant 0 : i32
    return %arg0, %c0_i32 : i32, i32
  }
  func.func @transform_11(%arg0: i32) -> (i32, i32) {
    %c0_i32 = arith.constant 0 : i32
    %c0_i32_0 = arith.constant 0 : i32
    return %arg0, %c0_i32 : i32, i32
  }
}

</mosaic_0001>

<llo_original>
// kernel: gru_policy_forward.1
$region0: #{gru_policy_forward.1}
  #allocation0 [shape = 'u32[]', space=smem, size = 0x4, offset = 0x4, fixed_abs, tag = 'smem constant byte address 0x4 - core index']
  #allocation1 [shape = 'u32[144,128]{1,0:T(1,128)}', space=vmem, size = 0x12000, scoped, tag = 'internal scratch']
  #allocation2 [shape = 'bf16[128,256]{1,0:T(8,128)(2,1)}', space=vmem, size = 0x10000, scoped, tag = 'scratch operand']
  %s0 = inlined_call_operand.vmem [shape: f32[256,32], index: 0, kind: input, shape index: {}]
  %s1 = inlined_call_operand.vmem [shape: f32[256,128], index: 1, kind: input, shape index: {}, may-alias: {1,11}]
  %s2 = inlined_call_operand.hbm [shape: bf16[32,128], index: 2, kind: input, shape index: {}]
  %s3 = inlined_call_operand.vmem [shape: f32[1,128], index: 3, kind: input, shape index: {}]
  %s4 = inlined_call_operand.vmem [shape: bf16[128,128], index: 4, kind: input, shape index: {}]
  %s5 = inlined_call_operand.vmem [shape: f32[1,128], index: 5, kind: input, shape index: {}]
  %s6 = inlined_call_operand.hbm [shape: bf16[256,512], index: 6, kind: input, shape index: {}]
  %s7 = inlined_call_operand.vmem [shape: f32[1,512], index: 7, kind: input, shape index: {}]
  %s8 = inlined_call_operand.hbm [shape: bf16[128,128], index: 8, kind: input, shape index: {}]
  %s9 = inlined_call_operand.vmem [shape: f32[1,128], index: 9, kind: input, shape index: {}]
  %s10 = inlined_call_operand.vmem [shape: bf16[256,128], index: 10, kind: output, shape index: {0}]
  %s11 = inlined_call_operand.vmem [shape: f32[256,128], index: 11, kind: output, shape index: {1}, may-alias: {1,11}]
  %12 = xla_tuple %s10, %s11
  %s13 = sld [smem:[#allocation0]]
  $region93: #{gru_policy_forward.1} parent=0
    _
  %s15 = ssub.s32 1, %s13
  %s16 = scalar_select 0, %s15, %s13
  $region1: #{gru_policy_forward.1} parent=0
    #allocation3 [shape = 'u8[8192]{0}', space=vmem, size = 0x2000, scoped, tag = 'input window, operand 2, single buffered']
    #allocation4 [shape = 's32[2]{0}', space=sflag, size = 0x8, scoped, tag = 'scoped memory for gru_policy_forward.1']
    #allocation5 [shape = 'u8[262144]{0}', space=vmem, size = 0x40000, scoped, tag = 'input window, operand 6, single buffered']
    #allocation6 [shape = 's32[1]{0}', space=sflag, size = 0x4, scoped, tag = 'scoped memory for gru_policy_forward.1']
    #allocation7 [shape = 'u8[32768]{0}', space=vmem, size = 0x8000, scoped, tag = 'input window, operand 8, single buffered']
    %17 = vsyncpa [#allocation4], 0
    %18 = vsyncpa [#allocation6], 0
    loop: start=0, step=1, limit=4
    $region2: #{gru_policy_forward.1} parent=1 // loop_pre_header
      _
    $region3: #{gru_policy_forward.1} parent=1 // loop_header
      %s20 = sphi 0, %s24
      %p21 = scmp.ge.s32.totalorder %s20, 4
      %s30 = sphi 0, %s32
      %s33 = sphi 0, %s30
      %s34 = sphi 0, %s33
      %s50 = sphi 0, %s34
      %s56 = sphi 0, %s58
      %s59 = sphi 0, %s56
      %s60 = sphi 0, %s59
      %s76 = sphi 0, %s60
      %s80 = sphi 0, %s80
      %s82 = sphi 0, %s80
      %s83 = sphi 0, %s82
      %s97 = sphi 0, %s83
      %s101 = sphi 0, %s101
      %s103 = sphi 0, %s101
      %s104 = sphi 0, %s103
      %s118 = sphi 0, %s104
      %s122 = sphi 0, %s122
      %s124 = sphi 0, %s122
      %s125 = sphi 0, %s124
      %s139 = sphi 0, %s125
      %s143 = sphi 0, %s143
      %s145 = sphi 0, %s143
      %s146 = sphi 0, %s145
      %s160 = sphi 0, %s146
      %s164 = sphi 0, %s164
      %s166 = sphi 0, %s164
      %s167 = sphi 0, %s166
      %s181 = sphi 0, %s167
      %s185 = sphi 0, %s185
      %s187 = sphi 0, %s185
      %s188 = sphi 0, %s187
      %s202 = sphi 0, %s188
      %s206 = sphi 0, %s206
      %s208 = sphi 0, %s206
      %s209 = sphi 0, %s208
      %s223 = sphi 0, %s209
      %s227 = sphi 0, %s227
      %s229 = sphi 0, %s227
      %s230 = sphi 0, %s229
      %s244 = sphi 0, %s230
      %s250 = sphi 0, %s252
      %s253 = sphi 0, %s250
      %s254 = sphi 0, %s253
      %s270 = sphi 0, %s254
      %s276 = sphi 0, %s278
      %s279 = sphi 0, %s276
      %s280 = sphi 0, %s279
      %s296 = sphi 0, %s280
    $region4: #{gru_policy_forward.1} parent=1 // loop_header_branch
      %23 = sbr.rel (%p21) target = $region8
    $region5: #{gru_policy_forward.1} parent=1 // loop_body
      %s25 = ssub.s32 %s20, 1
      %s26 = ssub.s32 %s20, 2
      %s27 = sadd.s32 %s20, 1
      %s28 = ssub.s32 %s20, %s27
      %p29 = scmp.eq.s32.totalorder %s28, 0
      %s31 = sadd.s32 %s30, 1
      %s32 = scalar_select %p29, %s30, %s31
      %p35 = pneg %p29
      %p36 = scmp.eq.s32.totalorder %s20, 1
      %p37 = por %p35, %p36
      %p38 = scmp.ne.s32.totalorder %s30, %s33
      %p39 = scmp.eq.s32.totalorder %s20, 0
      %p40 = por %p38, %p39
      %p41 = scmp.ne.s32.totalorder %s30, %s33
      %p42 = scmp.eq.s32.totalorder %s25, 1
      %p43 = por %p41, %p42
      %p44 = scmp.ne.s32.totalorder %s33, %s34
      %p45 = scmp.eq.s32.totalorder %s25, 0
      %p46 = por %p44, %p45
      %p47 = scmp.ne.s32.totalorder %s33, %s34
      %p48 = scmp.eq.s32.totalorder %s26, 1
      %p49 = por %p47, %p48
      %p51 = scmp.ne.s32.totalorder %s34, %s50
      %p52 = scmp.eq.s32.totalorder %s26, 0
      %p53 = por %p51, %p52
      %s54 = ssub.s32 %s20, %s27
      %p55 = scmp.eq.s32.totalorder %s54, 0
      %s57 = sadd.s32 %s56, 1
      %s58 = scalar_select %p55, %s56, %s57
      %p61 = pneg %p55
      %p62 = scmp.eq.s32.totalorder %s20, 1
      %p63 = por %p61, %p62
      %p64 = scmp.ne.s32.totalorder %s56, %s59
      %p65 = scmp.eq.s32.totalorder %s20, 0
      %p66 = por %p64, %p65
      %p67 = scmp.ne.s32.totalorder %s56, %s59
      %p68 = scmp.eq.s32.totalorder %s25, 1
      %p69 = por %p67, %p68
      %p70 = scmp.ne.s32.totalorder %s59, %s60
      %p71 = scmp.eq.s32.totalorder %s25, 0
      %p72 = por %p70, %p71
      %p73 = scmp.ne.s32.totalorder %s59, %s60
      %p74 = scmp.eq.s32.totalorder %s26, 1
      %p75 = por %p73, %p74
      %p77 = scmp.ne.s32.totalorder %s60, %s76
      %p78 = scmp.eq.s32.totalorder %s26, 0
      %p79 = por %p77, %p78
      %s81 = sadd.s32 %s80, 1
      %p84 = scmp.eq.s32.totalorder %s20, 1
      %p85 = scmp.ne.s32.totalorder %s80, %s82
      %p86 = scmp.eq.s32.totalorder %s20, 0
      %p87 = por %p85, %p86
      %p88 = scmp.ne.s32.totalorder %s80, %s82
      %p89 = scmp.eq.s32.totalorder %s25, 1
      %p90 = por %p88, %p89
      %p91 = scmp.ne.s32.totalorder %s82, %s83
      %p92 = scmp.eq.s32.totalorder %s25, 0
      %p93 = por %p91, %p92
      %p94 = scmp.ne.s32.totalorder %s82, %s83
      %p95 = scmp.eq.s32.totalorder %s26, 1
      %p96 = por %p94, %p95
      %p98 = scmp.ne.s32.totalorder %s83, %s97
      %p99 = scmp.eq.s32.totalorder %s26, 0
      %p100 = por %p98, %p99
      %s102 = sadd.s32 %s101, 1
      %p105 = scmp.eq.s32.totalorder %s20, 1
      %p106 = scmp.ne.s32.totalorder %s101, %s103
      %p107 = scmp.eq.s32.totalorder %s20, 0
      %p108 = por %p106, %p107
      %p109 = scmp.ne.s32.totalorder %s101, %s103
      %p110 = scmp.eq.s32.totalorder %s25, 1
      %p111 = por %p109, %p110
      %p112 = scmp.ne.s32.totalorder %s103, %s104
      %p113 = scmp.eq.s32.totalorder %s25, 0
      %p114 = por %p112, %p113
      %p115 = scmp.ne.s32.totalorder %s103, %s104
      %p116 = scmp.eq.s32.totalorder %s26, 1
      %p117 = por %p115, %p116
      %p119 = scmp.ne.s32.totalorder %s104, %s118
      %p120 = scmp.eq.s32.totalorder %s26, 0
      %p121 = por %p119, %p120
      %s123 = sadd.s32 %s122, 1
      %p126 = scmp.eq.s32.totalorder %s20, 1
      %p127 = scmp.ne.s32.totalorder %s122, %s124
      %p128 = scmp.eq.s32.totalorder %s20, 0
      %p129 = por %p127, %p128
      %p130 = scmp.ne.s32.totalorder %s122, %s124
      %p131 = scmp.eq.s32.totalorder %s25, 1
      %p132 = por %p130, %p131
      %p133 = scmp.ne.s32.totalorder %s124, %s125
      %p134 = scmp.eq.s32.totalorder %s25, 0
      %p135 = por %p133, %p134
      %p136 = scmp.ne.s32.totalorder %s124, %s125
      %p137 = scmp.eq.s32.totalorder %s26, 1
      %p138 = por %p136, %p137
      %p140 = scmp.ne.s32.totalorder %s125, %s139
      %p141 = scmp.eq.s32.totalorder %s26, 0
      %p142 = por %p140, %p141
      %s144 = sadd.s32 %s143, 1
      %p147 = scmp.eq.s32.totalorder %s20, 1
      %p148 = scmp.ne.s32.totalorder %s143, %s145
      %p149 = scmp.eq.s32.totalorder %s20, 0
      %p150 = por %p148, %p149
      %p151 = scmp.ne.s32.totalorder %s143, %s145
      %p152 = scmp.eq.s32.totalorder %s25, 1
      %p153 = por %p151, %p152
      %p154 = scmp.ne.s32.totalorder %s145, %s146
      %p155 = scmp.eq.s32.totalorder %s25, 0
      %p156 = por %p154, %p155
      %p157 = scmp.ne.s32.totalorder %s145, %s146
      %p158 = scmp.eq.s32.totalorder %s26, 1
      %p159 = por %p157, %p158
      %p161 = scmp.ne.s32.totalorder %s146, %s160
      %p162 = scmp.eq.s32.totalorder %s26, 0
      %p163 = por %p161, %p162
      %s165 = sadd.s32 %s164, 1
      %p168 = scmp.eq.s32.totalorder %s20, 1
      %p169 = scmp.ne.s32.totalorder %s164, %s166
      %p170 = scmp.eq.s32.totalorder %s20, 0
      %p171 = por %p169, %p170
      %p172 = scmp.ne.s32.totalorder %s164, %s166
      %p173 = scmp.eq.s32.totalorder %s25, 1
      %p174 = por %p172, %p173
      %p175 = scmp.ne.s32.totalorder %s166, %s167
      %p176 = scmp.eq.s32.totalorder %s25, 0
      %p177 = por %p175, %p176
      %p178 = scmp.ne.s32.totalorder %s166, %s167
      %p179 = scmp.eq.s32.totalorder %s26, 1
      %p180 = por %p178, %p179
      %p182 = scmp.ne.s32.totalorder %s167, %s181
      %p183 = scmp.eq.s32.totalorder %s26, 0
      %p184 = por %p182, %p183
      %s186 = sadd.s32 %s185, 1
      %p189 = scmp.eq.s32.totalorder %s20, 1
      %p190 = scmp.ne.s32.totalorder %s185, %s187
      %p191 = scmp.eq.s32.totalorder %s20, 0
      %p192 = por %p190, %p191
      %p193 = scmp.ne.s32.totalorder %s185, %s187
      %p194 = scmp.eq.s32.totalorder %s25, 1
      %p195 = por %p193, %p194
      %p196 = scmp.ne.s32.totalorder %s187, %s188
      %p197 = scmp.eq.s32.totalorder %s25, 0
      %p198 = por %p196, %p197
      %p199 = scmp.ne.s32.totalorder %s187, %s188
      %p200 = scmp.eq.s32.totalorder %s26, 1
      %p201 = por %p199, %p200
      %p203 = scmp.ne.s32.totalorder %s188, %s202
      %p204 = scmp.eq.s32.totalorder %s26, 0
      %p205 = por %p203, %p204
      %s207 = sadd.s32 %s206, 1
      %p210 = scmp.eq.s32.totalorder %s20, 1
      %p211 = scmp.ne.s32.totalorder %s206, %s208
      %p212 = scmp.eq.s32.totalorder %s20, 0
      %p213 = por %p211, %p212
      %p214 = scmp.ne.s32.totalorder %s206, %s208
      %p215 = scmp.eq.s32.totalorder %s25, 1
      %p216 = por %p214, %p215
      %p217 = scmp.ne.s32.totalorder %s208, %s209
      %p218 = scmp.eq.s32.totalorder %s25, 0
      %p219 = por %p217, %p218
      %p220 = scmp.ne.s32.totalorder %s208, %s209
      %p221 = scmp.eq.s32.totalorder %s26, 1
      %p222 = por %p220, %p221
      %p224 = scmp.ne.s32.totalorder %s209, %s223
      %p225 = scmp.eq.s32.totalorder %s26, 0
      %p226 = por %p224, %p225
      %s228 = sadd.s32 %s227, 1
      %p231 = scmp.eq.s32.totalorder %s20, 1
      %p232 = scmp.ne.s32.totalorder %s227, %s229
      %p233 = scmp.eq.s32.totalorder %s20, 0
      %p234 = por %p232, %p233
      %p235 = scmp.ne.s32.totalorder %s227, %s229
      %p236 = scmp.eq.s32.totalorder %s25, 1
      %p237 = por %p235, %p236
      %p238 = scmp.ne.s32.totalorder %s229, %s230
      %p239 = scmp.eq.s32.totalorder %s25, 0
      %p240 = por %p238, %p239
      %p241 = scmp.ne.s32.totalorder %s229, %s230
      %p242 = scmp.eq.s32.totalorder %s26, 1
      %p243 = por %p241, %p242
      %p245 = scmp.ne.s32.totalorder %s230, %s244
      %p246 = scmp.eq.s32.totalorder %s26, 0
      %p247 = por %p245, %p246
      %s248 = ssub.s32 %s20, %s27
      %p249 = scmp.eq.s32.totalorder %s248, 0
      %s251 = sadd.s32 %s250, 1
      %s252 = scalar_select %p249, %s250, %s251
      %p255 = pneg %p249
      %p256 = scmp.eq.s32.totalorder %s20, 1
      %p257 = por %p255, %p256
      %p258 = scmp.ne.s32.totalorder %s250, %s253
      %p259 = scmp.eq.s32.totalorder %s20, 0
      %p260 = por %p258, %p259
      %p261 = scmp.ne.s32.totalorder %s250, %s253
      %p262 = scmp.eq.s32.totalorder %s25, 1
      %p263 = por %p261, %p262
      %p264 = scmp.ne.s32.totalorder %s253, %s254
      %p265 = scmp.eq.s32.totalorder %s25, 0
      %p266 = por %p264, %p265
      %p267 = scmp.ne.s32.totalorder %s253, %s254
      %p268 = scmp.eq.s32.totalorder %s26, 1
      %p269 = por %p267, %p268
      %p271 = scmp.ne.s32.totalorder %s254, %s270
      %p272 = scmp.eq.s32.totalorder %s26, 0
      %p273 = por %p271, %p272
      %s274 = ssub.s32 %s20, %s27
      %p275 = scmp.eq.s32.totalorder %s274, 0
      %s277 = sadd.s32 %s276, 1
      %s278 = scalar_select %p275, %s276, %s277
      %p281 = pneg %p275
      %p282 = scmp.eq.s32.totalorder %s20, 1
      %p283 = por %p281, %p282
      %p284 = scmp.ne.s32.totalorder %s276, %s279
      %p285 = scmp.eq.s32.totalorder %s20, 0
      %p286 = por %p284, %p285
      %p287 = scmp.ne.s32.totalorder %s276, %s279
      %p288 = scmp.eq.s32.totalorder %s25, 1
      %p289 = por %p287, %p288
      %p290 = scmp.ne.s32.totalorder %s279, %s280
      %p291 = scmp.eq.s32.totalorder %s25, 0
      %p292 = por %p290, %p291
      %p293 = scmp.ne.s32.totalorder %s279, %s280
      %p294 = scmp.eq.s32.totalorder %s26, 1
      %p295 = por %p293, %p294
      %p297 = scmp.ne.s32.totalorder %s280, %s296
      %p298 = scmp.eq.s32.totalorder %s26, 0
      %p299 = por %p297, %p298
      %p300 = scmp.le.s32.totalorder 1, %s20
      %p301 = scmp.lt.s32.totalorder %s20, 3
      %p302 = pnand %p300, %p301
      %p303 = pneg %p302
      // Predicated region
      $region9: #{gru_policy_forward.1} parent=5 // pred_check
        _
      $region10: #{gru_policy_forward.1} parent=5 // pred_check_branch
        %305 = sbr.rel (%p302) target = $region12
      $region11: #{gru_policy_forward.1} parent=5 // pred_region
        %s306 = ssub.s32 %s20, 1
        // Predicated region
        $region13: #{gru_policy_forward.1} parent=11 // pred_check
          %p307 = pneg %p93
        $region14: #{gru_policy_forward.1} parent=11 // pred_check_branch
          %309 = sbr.rel (%p307) target = $region16
        $region15: #{gru_policy_forward.1} parent=11 // pred_region
          %s311 = ssub.s32 256, 256
          %312 = vsyncadd [#allocation4], %s311
          %s313 = sshll.u32 [#allocation3], 4
          %s314 = int_to_ptr.vmem [resolvable:$true] %s313
          %319 = dma.hbm_to_vmem [thread:$0]  %s2, 256, %s314, [#allocation4], 64, 64, 4
        $region16: #{gru_policy_forward.1} parent=11 // pred_fallthru
          _
        // Predicated region
        $region17: #{gru_policy_forward.1} parent=11 // pred_check
          %p320 = pneg %p114
        $region18: #{gru_policy_forward.1} parent=11 // pred_check_branch
          %322 = sbr.rel (%p320) target = $region20
        $region19: #{gru_policy_forward.1} parent=11 // pred_region
          _
        $region20: #{gru_policy_forward.1} parent=11 // pred_fallthru
          _
        // Predicated region
        $region21: #{gru_policy_forward.1} parent=11 // pred_check
          %p323 = pneg %p135
        $region22: #{gru_policy_forward.1} parent=11 // pred_check_branch
          %325 = sbr.rel (%p323) target = $region24
        $region23: #{gru_policy_forward.1} parent=11 // pred_region
          _
        $region24: #{gru_policy_forward.1} parent=11 // pred_fallthru
          _
        // Predicated region
        $region25: #{gru_policy_forward.1} parent=11 // pred_check
          %p326 = pneg %p156
        $region26: #{gru_policy_forward.1} parent=11 // pred_check_branch
          %328 = sbr.rel (%p326) target = $region28
        $region27: #{gru_policy_forward.1} parent=11 // pred_region
          _
        $region28: #{gru_policy_forward.1} parent=11 // pred_fallthru
          _
        // Predicated region
        $region29: #{gru_policy_forward.1} parent=11 // pred_check
          %p329 = pneg %p177
        $region30: #{gru_policy_forward.1} parent=11 // pred_check_branch
          %331 = sbr.rel (%p329) target = $region32
        $region31: #{gru_policy_forward.1} parent=11 // pred_region
          %s333 = ssub.s32 8192, 8192
          %334 = vsyncadd [#allocation6], %s333
          %s335 = sshll.u32 [#allocation5], 4
          %s336 = int_to_ptr.vmem [resolvable:$true] %s335
          %341 = dma.hbm_to_vmem [thread:$0]  %s6, 8192, %s336, [#allocation6], 256, 256, 16
        $region32: #{gru_policy_forward.1} parent=11 // pred_fallthru
          _
        // Predicated region
        $region33: #{gru_policy_forward.1} parent=11 // pred_check
          %p342 = pneg %p198
        $region34: #{gru_policy_forward.1} parent=11 // pred_check_branch
          %344 = sbr.rel (%p342) target = $region36
        $region35: #{gru_policy_forward.1} parent=11 // pred_region
          _
        $region36: #{gru_policy_forward.1} parent=11 // pred_fallthru
          _
        // Predicated region
        $region37: #{gru_policy_forward.1} parent=11 // pred_check
          %p345 = pneg %p219
        $region38: #{gru_policy_forward.1} parent=11 // pred_check_branch
          %347 = sbr.rel (%p345) target = $region40
        $region39: #{gru_policy_forward.1} parent=11 // pred_region
          %s349 = ssub.s32 1024, 1024
          %350 = vsyncadd [#allocation6], %s349
          %s351 = sshll.u32 [#allocation7], 4
          %s352 = int_to_ptr.vmem [resolvable:$true] %s351
          %357 = dma.hbm_to_vmem [thread:$0]  %s8, 1024, %s352, [#allocation6], 64, 64, 4
        $region40: #{gru_policy_forward.1} parent=11 // pred_fallthru
          _
        // Predicated region
        $region41: #{gru_policy_forward.1} parent=11 // pred_check
          %p358 = pneg %p240
        $region42: #{gru_policy_forward.1} parent=11 // pred_check_branch
          %360 = sbr.rel (%p358) target = $region44
        $region43: #{gru_policy_forward.1} parent=11 // pred_region
          _
        $region44: #{gru_policy_forward.1} parent=11 // pred_fallthru
          _
      $region12: #{gru_policy_forward.1} parent=5 // pred_fallthru
        _
      %p361 = scmp.lt.s32.totalorder %s20, 2
      // Predicated region
      $region45: #{gru_policy_forward.1} parent=5 // pred_check
        %p362 = pneg %p361
      $region46: #{gru_policy_forward.1} parent=5 // pred_check_branch
        %364 = sbr.rel (%p362) target = $region48
      $region47: #{gru_policy_forward.1} parent=5 // pred_region
        // Predicated region
        $region49: #{gru_policy_forward.1} parent=47 // pred_check
          %p365 = pneg %p40
        $region50: #{gru_policy_forward.1} parent=47 // pred_check_branch
          %367 = sbr.rel (%p365) target = $region52
        $region51: #{gru_policy_forward.1} parent=47 // pred_region
          %s368 = smul.u32 16, %s20
          %p369 = scmp.lt.s32.totalorder %s368, 31
          %s370 = scalar_select %p369, %s368, 31
          %s371 = smul.addr %s370, 8
          %s372 = scalar_lea.vmem %s0, %s371
          %s373 = smul.u32 16, %s20
        $region52: #{gru_policy_forward.1} parent=47 // pred_fallthru
          _
        // Predicated region
        $region53: #{gru_policy_forward.1} parent=47 // pred_check
          %p374 = pneg %p66
        $region54: #{gru_policy_forward.1} parent=47 // pred_check_branch
          %376 = sbr.rel (%p374) target = $region56
        $region55: #{gru_policy_forward.1} parent=47 // pred_region
          %s377 = smul.u32 16, %s20
          %p378 = scmp.lt.s32.totalorder %s377, 31
          %s379 = scalar_select %p378, %s377, 31
          %s380 = smul.addr %s379, 8
          %s381 = scalar_lea.vmem %s1, %s380
          %s382 = smul.u32 16, %s20
        $region56: #{gru_policy_forward.1} parent=47 // pred_fallthru
          _
      $region48: #{gru_policy_forward.1} parent=5 // pred_fallthru
        _
      %p383 = scmp.le.s32.totalorder 1, %s20
      %p384 = scmp.lt.s32.totalorder %s20, 3
      %p385 = pnand %p383, %p384
      %p386 = pneg %p385
      // Predicated region
      $region57: #{gru_policy_forward.1} parent=5 // pred_check
        _
      $region58: #{gru_policy_forward.1} parent=5 // pred_check_branch
        %388 = sbr.rel (%p385) target = $region60
      $region59: #{gru_policy_forward.1} parent=5 // pred_region
        %s389 = ssub.s32 %s20, 1
        // Predicated region
        $region61: #{gru_policy_forward.1} parent=59 // pred_check
          %p390 = pneg %p93
        $region62: #{gru_policy_forward.1} parent=59 // pred_check_branch
          %392 = sbr.rel (%p390) target = $region64
        $region63: #{gru_policy_forward.1} parent=59 // pred_region
          %393 = dma.done [#allocation4], 256
        $region64: #{gru_policy_forward.1} parent=59 // pred_fallthru
          _
        // Predicated region
        $region65: #{gru_policy_forward.1} parent=59 // pred_check
          %p394 = pneg %p177
        $region66: #{gru_policy_forward.1} parent=59 // pred_check_branch
          %396 = sbr.rel (%p394) target = $region68
        $region67: #{gru_policy_forward.1} parent=59 // pred_region
          %397 = dma.done [#allocation6], 8192
        $region68: #{gru_policy_forward.1} parent=59 // pred_fallthru
          _
        // Predicated region
        $region69: #{gru_policy_forward.1} parent=59 // pred_check
          %p398 = pneg %p219
        $region70: #{gru_policy_forward.1} parent=59 // pred_check_branch
          %400 = sbr.rel (%p398) target = $region72
        $region71: #{gru_policy_forward.1} parent=59 // pred_region
          %401 = dma.done [#allocation6], 1024
        $region72: #{gru_policy_forward.1} parent=59 // pred_fallthru
          _
        %s402 = smul.u32 16, %s25
        %p403 = scmp.lt.s32.totalorder %s402, 31
        %s404 = scalar_select %p403, %s402, 31
        %s405 = smul.addr %s404, 8
        %s406 = scalar_lea.vmem %s0, %s405
        %p407 = pneg %p46
        %p408 = pneg %p43
        %s409 = smul.u32 16, %s25
        %p410 = scmp.lt.s32.totalorder %s409, 31
        %s411 = scalar_select %p410, %s409, 31
        %s412 = smul.addr %s411, 8
        %s413 = scalar_lea.vmem %s1, %s412
        %p414 = pneg %p72
        %p415 = pneg %p69
        %p416 = pneg %p93
        %p417 = pneg %p90
        %p418 = pneg %p114
        %p419 = pneg %p111
        %p420 = pneg %p135
        %p421 = pneg %p132
        %p422 = pneg %p156
        %p423 = pneg %p153
        %p424 = pneg %p177
        %p425 = pneg %p174
        %p426 = pneg %p198
        %p427 = pneg %p195
        %p428 = pneg %p219
        %p429 = pneg %p216
        %p430 = pneg %p240
        %p431 = pneg %p237
        %p432 = pneg %p266
        %p433 = pneg %p263
        %s434 = smul.u32 16, %s25
        %p435 = scmp.lt.s32.totalorder %s434, 31
        %s436 = scalar_select %p435, %s434, 31
        %s437 = smul.addr %s436, 4
        %s438 = scalar_lea.vmem %s10, %s437
        %p439 = pneg %p292
        %p440 = pneg %p289
        %s441 = smul.u32 16, %s25
        %p442 = scmp.lt.s32.totalorder %s441, 31
        %s443 = scalar_select %p442, %s441, 31
        %s444 = smul.addr %s443, 8
        %s445 = scalar_lea.vmem %s11, %s444
        %s446 = smul.u32 16, %s25
        %p447 = scmp.lt.s32.totalorder %s446, 31
        %s448 = scalar_select %p447, %s446, 31
        %s449 = smul.addr %s448, 8
        %s450 = scalar_lea.vmem %s0, %s449
        %s451 = smul.u32 16, %s25
        %s452 = smul.u32 16, %s25
        %p453 = scmp.lt.s32.totalorder %s452, 31
        %s454 = scalar_select %p453, %s452, 31
        %s455 = smul.addr %s454, 8
        %s456 = scalar_lea.vmem %s1, %s455
        %s457 = smul.u32 16, %s25
        %s458 = smul.u32 16, %s25
        %p459 = scmp.lt.s32.totalorder %s458, 31
        %s460 = scalar_select %p459, %s458, 31
        %s461 = smul.addr %s460, 4
        %s462 = scalar_lea.vmem %s10, %s461
        %s463 = smul.u32 16, %s25
        %s464 = smul.u32 16, %s25
        %p465 = scmp.lt.s32.totalorder %s464, 31
        %s466 = scalar_select %p465, %s464, 31
        %s467 = smul.addr %s466, 8
        %s468 = scalar_lea.vmem %s11, %s467
        %s469 = smul.u32 16, %s25
        %v471 = vld [vmem:[%s450] sm:$0xff]
        %v472 = vld [vmem:[%s450 + $0x8] sm:$0xff]
        %v473 = vld [vmem:[%s450 + $0x10] sm:$0xff]
        %v474 = vld [vmem:[%s450 + $0x18] sm:$0xff]
        %v475 = vld [vmem:[%s450 + $0x20] sm:$0xff]
        %v476 = vld [vmem:[%s450 + $0x28] sm:$0xff]
        %v477 = vld [vmem:[%s450 + $0x30] sm:$0xff]
        %v478 = vld [vmem:[%s450 + $0x38] sm:$0xff]
        %v479 = vld [vmem:[%s450 + $0x40] sm:$0xff]
        %v480 = vld [vmem:[%s450 + $0x48] sm:$0xff]
        %v481 = vld [vmem:[%s450 + $0x50] sm:$0xff]
        %v482 = vld [vmem:[%s450 + $0x58] sm:$0xff]
        %v483 = vld [vmem:[%s450 + $0x60] sm:$0xff]
        %v484 = vld [vmem:[%s450 + $0x68] sm:$0xff]
        %v485 = vld [vmem:[%s450 + $0x70] sm:$0xff]
        %v486 = vld [vmem:[%s450 + $0x78] sm:$0xff]
        %v487 = vpack.c.bf16 %v472, %v471
        %v488 = vpack.c.bf16 %v474, %v473
        %v489 = vpack.c.bf16 %v476, %v475
        %v490 = vpack.c.bf16 %v478, %v477
        %v491 = vpack.c.bf16 %v480, %v479
        %v492 = vpack.c.bf16 %v482, %v481
        %v493 = vpack.c.bf16 %v484, %v483
        %v494 = vpack.c.bf16 %v486, %v485
        %v495 = vld [vmem:[%s456] sm:$0xff]
        %v496 = vld [vmem:[%s456 + $0x8] sm:$0xff]
        %v497 = vld [vmem:[%s456 + $0x10] sm:$0xff]
        %v498 = vld [vmem:[%s456 + $0x18] sm:$0xff]
        %v499 = vld [vmem:[%s456 + $0x20] sm:$0xff]
        %v500 = vld [vmem:[%s456 + $0x28] sm:$0xff]
        %v501 = vld [vmem:[%s456 + $0x30] sm:$0xff]
        %v502 = vld [vmem:[%s456 + $0x38] sm:$0xff]
        %v503 = vld [vmem:[%s456 + $0x40] sm:$0xff]
        %v504 = vld [vmem:[%s456 + $0x48] sm:$0xff]
        %v505 = vld [vmem:[%s456 + $0x50] sm:$0xff]
        %v506 = vld [vmem:[%s456 + $0x58] sm:$0xff]
        %v507 = vld [vmem:[%s456 + $0x60] sm:$0xff]
        %v508 = vld [vmem:[%s456 + $0x68] sm:$0xff]
        %v509 = vld [vmem:[%s456 + $0x70] sm:$0xff]
        %v510 = vld [vmem:[%s456 + $0x78] sm:$0xff]
        %v511 = vld [vmem:[#allocation3] sm:$0xf]
        %v512 = vld [vmem:[#allocation3 + $0x4] sm:$0xf]
        %v513 = vld [vmem:[#allocation3 + $0x8] sm:$0xf]
        %v514 = vld [vmem:[#allocation3 + $0xc] sm:$0xf]
        %v515 = vld [vmem:[%s3] sm:$0x1]
        %v517 = vlaneseq
        %v518 = vshrl.u32 %v517, 7
        %v519 = vsub.s32 0, %v518
        %v520 = vrot.slane %v515, %v519
        %v526 = vunpack.c.l.b16 %v511
        %v527 = vunpack.c.l.b16 %v512
        %v528 = vunpack.c.l.b16 %v513
        %v529 = vunpack.c.l.b16 %v514
        %v530 = vpack.c.b16 %v527, %v526
        %v531 = vpack.c.b16 %v529, %v528
        %vm534 = vcmask 261120
        %v536 = vsel %vm534, %v487, 0
        %v539 = vsel %vm534, %v488, 0
        %v542 = vsel %vm534, %v489, 0
        %v545 = vsel %vm534, %v490, 0
        %v548 = vsel %vm534, %v491, 0
        %v551 = vsel %vm534, %v492, 0
        %v554 = vsel %vm534, %v493, 0
        %v557 = vsel %vm534, %v494, 0
        %559 = vmatprep.subr.bf16.mxu0 0
        %560 = vmatpush1.bf16.msra.mxu0 0
        %561 = vmatprep.subr.bf16.mxu0 0
        %562 = vmatpush1.bf16.msra.mxu0 0
        %563 = vmatprep.subr.bf16.mxu0 0
        %564 = vmatpush1.bf16.msra.mxu0 0
        %565 = vmatprep.subr.bf16.mxu0 0
        %566 = vmatpush1.bf16.msra.mxu0 0
        %567 = vmatprep.subr.bf16.mxu0 0
        %568 = vmatpush1.bf16.msra.mxu0 0
        %569 = vmatprep.subr.bf16.mxu0 0
        %570 = vmatpush1.bf16.msra.mxu0 0
        %571 = vmatprep.subr.bf16.mxu0 0
        %572 = vmatpush1.bf16.msra.mxu0 %v531
        %573 = vmatprep.subr.bf16.mxu0 0
        %574 = vmatpush1.bf16.msra.mxu0 %v530
        %575 = vmatprep.subr.bf16.mxu0 0
        %576 = vmatpush2.bf16.msra.mxu0 0
        %577 = vmatprep.subr.bf16.mxu0 0
        %578 = vmatpush2.bf16.msra.mxu0 0
        %579 = vmatprep.subr.bf16.mxu0 0
        %580 = vmatpush2.bf16.msra.mxu0 0
        %581 = vmatprep.subr.bf16.mxu0 0
        %582 = vmatpush2.bf16.msra.mxu0 0
        %583 = vmatprep.subr.bf16.mxu0 0
        %584 = vmatpush2.bf16.msra.mxu0 0
        %585 = vmatprep.subr.bf16.mxu0 0
        %586 = vmatpush2.bf16.msra.mxu0 0
        %587 = vmatprep.subr.bf16.mxu0 0
        %588 = vmatpush2.bf16.msra.mxu0 0
        %589 = vmatprep.subr.bf16.mxu0 0
        %590 = vmatpush2.bf16.msra.mxu0 0
        %591 = vmatprep.mubr.bf16.mxu0 0
        %592 = vmatmul.mubr.bf16.gmra.mxu0 %v536
        %v593 = vpop.f32.mrf.mxu0
        %v594 = vadd.f32 %v520, %v593
        %v595 = vpop.f32.mrf.mxu0
        %v596 = vpop.f32.mrf.mxu0
        %v597 = vadd.f32 %v520, %v596
        %v598 = vpop.f32.mrf.mxu0
        %599 = vmatprep.mubr.bf16.mxu0 0
        %600 = vmatmul.mubr.bf16.gmra.mxu0 %v539
        %v601 = vpop.f32.mrf.mxu0
        %v602 = vadd.f32 %v520, %v601
        %v603 = vpop.f32.mrf.mxu0
        %v604 = vpop.f32.mrf.mxu0
        %v605 = vadd.f32 %v520, %v604
        %v606 = vpop.f32.mrf.mxu0
        %607 = vmatprep.mubr.bf16.mxu0 0
        %608 = vmatmul.mubr.bf16.gmra.mxu0 %v542
        %v609 = vpop.f32.mrf.mxu0
        %v610 = vadd.f32 %v520, %v609
        %v611 = vpop.f32.mrf.mxu0
        %v612 = vpop.f32.mrf.mxu0
        %v613 = vadd.f32 %v520, %v612
        %v614 = vpop.f32.mrf.mxu0
        %615 = vmatprep.mubr.bf16.mxu0 0
        %616 = vmatmul.mubr.bf16.gmra.mxu0 %v545
        %v617 = vpop.f32.mrf.mxu0
        %v618 = vadd.f32 %v520, %v617
        %v619 = vpop.f32.mrf.mxu0
        %v620 = vpop.f32.mrf.mxu0
        %v621 = vadd.f32 %v520, %v620
        %v622 = vpop.f32.mrf.mxu0
        %623 = vmatprep.mubr.bf16.mxu0 0
        %624 = vmatmul.mubr.bf16.gmra.mxu0 %v548
        %v625 = vpop.f32.mrf.mxu0
        %v626 = vadd.f32 %v520, %v625
        %v627 = vpop.f32.mrf.mxu0
        %v628 = vpop.f32.mrf.mxu0
        %v629 = vadd.f32 %v520, %v628
        %v630 = vpop.f32.mrf.mxu0
        %631 = vmatprep.mubr.bf16.mxu0 0
        %632 = vmatmul.mubr.bf16.gmra.mxu0 %v551
        %v633 = vpop.f32.mrf.mxu0
        %v634 = vadd.f32 %v520, %v633
        %v635 = vpop.f32.mrf.mxu0
        %v636 = vpop.f32.mrf.mxu0
        %v637 = vadd.f32 %v520, %v636
        %v638 = vpop.f32.mrf.mxu0
        %639 = vmatprep.mubr.bf16.mxu0 0
        %640 = vmatmul.mubr.bf16.gmra.mxu0 %v554
        %v641 = vpop.f32.mrf.mxu0
        %v642 = vadd.f32 %v520, %v641
        %v643 = vpop.f32.mrf.mxu0
        %v644 = vpop.f32.mrf.mxu0
        %v645 = vadd.f32 %v520, %v644
        %v646 = vpop.f32.mrf.mxu0
        %647 = vmatprep.mubr.bf16.mxu0 0
        %648 = vmatmul.mubr.bf16.gmra.mxu0 %v557
        %v649 = vpop.f32.mrf.mxu0
        %v650 = vadd.f32 %v520, %v649
        %v651 = vpop.f32.mrf.mxu0
        %v652 = vpop.f32.mrf.mxu0
        %v653 = vadd.f32 %v520, %v652
        %v654 = vpop.f32.mrf.mxu0
        %655 = vdwg.mxu0
        %vm656 = vcmp.gt.f32.partialorder %v594, 0.0
        %vm657 = vcmp.gt.f32.partialorder %v597, 0.0
        %vm658 = vcmp.gt.f32.partialorder %v602, 0.0
        %vm659 = vcmp.gt.f32.partialorder %v605, 0.0
        %vm660 = vcmp.gt.f32.partialorder %v610, 0.0
        %vm661 = vcmp.gt.f32.partialorder %v613, 0.0
        %vm662 = vcmp.gt.f32.partialorder %v618, 0.0
        %vm663 = vcmp.gt.f32.partialorder %v621, 0.0
        %vm664 = vcmp.gt.f32.partialorder %v626, 0.0
        %vm665 = vcmp.gt.f32.partialorder %v629, 0.0
        %vm666 = vcmp.gt.f32.partialorder %v634, 0.0
        %vm667 = vcmp.gt.f32.partialorder %v637, 0.0
        %vm668 = vcmp.gt.f32.partialorder %v642, 0.0
        %vm669 = vcmp.gt.f32.partialorder %v645, 0.0
        %vm670 = vcmp.gt.f32.partialorder %v650, 0.0
        %vm671 = vcmp.gt.f32.partialorder %v653, 0.0
        %v672 = vmul.f32 %v594, 0.01
        %v673 = vmul.f32 %v597, 0.01
        %v674 = vmul.f32 %v602, 0.01
        %v675 = vmul.f32 %v605, 0.01
        %v676 = vmul.f32 %v610, 0.01
        %v677 = vmul.f32 %v613, 0.01
        %v678 = vmul.f32 %v618, 0.01
        %v679 = vmul.f32 %v621, 0.01
        %v680 = vmul.f32 %v626, 0.01
        %v681 = vmul.f32 %v629, 0.01
        %v682 = vmul.f32 %v634, 0.01
        %v683 = vmul.f32 %v637, 0.01
        %v684 = vmul.f32 %v642, 0.01
        %v685 = vmul.f32 %v645, 0.01
        %v686 = vmul.f32 %v650, 0.01
        %v687 = vmul.f32 %v653, 0.01
        %v688 = vsel %vm656, %v594, %v672
        %v689 = vsel %vm657, %v597, %v673
        %v690 = vsel %vm658, %v602, %v674
        %v691 = vsel %vm659, %v605, %v675
        %v692 = vsel %vm660, %v610, %v676
        %v693 = vsel %vm661, %v613, %v677
        %v694 = vsel %vm662, %v618, %v678
        %v695 = vsel %vm663, %v621, %v679
        %v696 = vsel %vm664, %v626, %v680
        %v697 = vsel %vm665, %v629, %v681
        %v698 = vsel %vm666, %v634, %v682
        %v699 = vsel %vm667, %v637, %v683
        %v700 = vsel %vm668, %v642, %v684
        %v701 = vsel %vm669, %v645, %v685
        %v702 = vsel %vm670, %v650, %v686
        %v703 = vsel %vm671, %v653, %v687
        %v704 = vpack.c.bf16 %v689, %v688
        %v705 = vpack.c.bf16 %v691, %v690
        %v706 = vpack.c.bf16 %v693, %v692
        %v707 = vpack.c.bf16 %v695, %v694
        %v708 = vpack.c.bf16 %v697, %v696
        %v709 = vpack.c.bf16 %v699, %v698
        %v710 = vpack.c.bf16 %v701, %v700
        %v711 = vpack.c.bf16 %v703, %v702
        %v712 = vld [vmem:[%s4] sm:$0xf]
        %v713 = vld [vmem:[%s4 + $0x4] sm:$0xf]
        %v714 = vld [vmem:[%s4 + $0x8] sm:$0xf]
        %v715 = vld [vmem:[%s4 + $0xc] sm:$0xf]
        %v716 = vld [vmem:[%s4 + $0x10] sm:$0xf]
        %v717 = vld [vmem:[%s4 + $0x14] sm:$0xf]
        %v718 = vld [vmem:[%s4 + $0x18] sm:$0xf]
        %v719 = vld [vmem:[%s4 + $0x1c] sm:$0xf]
        %v720 = vld [vmem:[%s4 + $0x20] sm:$0xf]
        %v721 = vld [vmem:[%s4 + $0x24] sm:$0xf]
        %v722 = vld [vmem:[%s4 + $0x28] sm:$0xf]
        %v723 = vld [vmem:[%s4 + $0x2c] sm:$0xf]
        %v724 = vld [vmem:[%s4 + $0x30] sm:$0xf]
        %v725 = vld [vmem:[%s4 + $0x34] sm:$0xf]
        %v726 = vld [vmem:[%s4 + $0x38] sm:$0xf]
        %v727 = vld [vmem:[%s4 + $0x3c] sm:$0xf]
        %v728 = vld [vmem:[%s5] sm:$0x1]
        %v730 = vlaneseq
        %v731 = vshrl.u32 %v730, 7
        %v732 = vsub.s32 0, %v731
        %v733 = vrot.slane %v728, %v732
        %v751 = vunpack.c.l.b16 %v712
        %v752 = vunpack.c.l.b16 %v713
        %v753 = vunpack.c.l.b16 %v714
        %v754 = vunpack.c.l.b16 %v715
        %v755 = vunpack.c.l.b16 %v716
        %v756 = vunpack.c.l.b16 %v717
        %v757 = vunpack.c.l.b16 %v718
        %v758 = vunpack.c.l.b16 %v719
        %v759 = vunpack.c.l.b16 %v720
        %v760 = vunpack.c.l.b16 %v721
        %v761 = vunpack.c.l.b16 %v722
        %v762 = vunpack.c.l.b16 %v723
        %v763 = vunpack.c.l.b16 %v724
        %v764 = vunpack.c.l.b16 %v725
        %v765 = vunpack.c.l.b16 %v726
        %v766 = vunpack.c.l.b16 %v727
        %v767 = vpack.c.b16 %v752, %v751
        %v768 = vpack.c.b16 %v754, %v753
        %v769 = vpack.c.b16 %v756, %v755
        %v770 = vpack.c.b16 %v758, %v757
        %v771 = vpack.c.b16 %v760, %v759
        %v772 = vpack.c.b16 %v762, %v761
        %v773 = vpack.c.b16 %v764, %v763
        %v774 = vpack.c.b16 %v766, %v765
        %783 = vmatprep.subr.bf16.mxu0 0
        %784 = vmatpush1.bf16.msra.mxu0 %v774
        %785 = vmatprep.subr.bf16.mxu0 0
        %786 = vmatpush1.bf16.msra.mxu0 %v773
        %787 = vmatprep.subr.bf16.mxu0 0
        %788 = vmatpush1.bf16.msra.mxu0 %v772
        %789 = vmatprep.subr.bf16.mxu0 0
        %790 = vmatpush1.bf16.msra.mxu0 %v771
        %791 = vmatprep.subr.bf16.mxu0 0
        %792 = vmatpush1.bf16.msra.mxu0 %v770
        %793 = vmatprep.subr.bf16.mxu0 0
        %794 = vmatpush1.bf16.msra.mxu0 %v769
        %795 = vmatprep.subr.bf16.mxu0 0
        %796 = vmatpush1.bf16.msra.mxu0 %v768
        %797 = vmatprep.subr.bf16.mxu0 0
        %798 = vmatpush1.bf16.msra.mxu0 %v767
        %799 = vmatprep.subr.bf16.mxu0 0
        %800 = vmatpush2.bf16.msra.mxu0 0
        %801 = vmatprep.subr.bf16.mxu0 0
        %802 = vmatpush2.bf16.msra.mxu0 0
        %803 = vmatprep.subr.bf16.mxu0 0
        %804 = vmatpush2.bf16.msra.mxu0 0
        %805 = vmatprep.subr.bf16.mxu0 0
        %806 = vmatpush2.bf16.msra.mxu0 0
        %807 = vmatprep.subr.bf16.mxu0 0
        %808 = vmatpush2.bf16.msra.mxu0 0
        %809 = vmatprep.subr.bf16.mxu0 0
        %810 = vmatpush2.bf16.msra.mxu0 0
        %811 = vmatprep.subr.bf16.mxu0 0
        %812 = vmatpush2.bf16.msra.mxu0 0
        %813 = vmatprep.subr.bf16.mxu0 0
        %814 = vmatpush2.bf16.msra.mxu0 0
        %815 = vmatprep.mubr.bf16.mxu0 0
        %816 = vmatmul.mubr.bf16.gmra.mxu0 %v704
        %v817 = vpop.f32.mrf.mxu0
        %v818 = vadd.f32 %v733, %v817
        %v819 = vpop.f32.mrf.mxu0
        %v820 = vpop.f32.mrf.mxu0
        %v821 = vadd.f32 %v733, %v820
        %v822 = vpop.f32.mrf.mxu0
        %823 = vmatprep.mubr.bf16.mxu0 0
        %824 = vmatmul.mubr.bf16.gmra.mxu0 %v705
        %v825 = vpop.f32.mrf.mxu0
        %v826 = vadd.f32 %v733, %v825
        %v827 = vpop.f32.mrf.mxu0
        %v828 = vpop.f32.mrf.mxu0
        %v829 = vadd.f32 %v733, %v828
        %v830 = vpop.f32.mrf.mxu0
        %831 = vmatprep.mubr.bf16.mxu0 0
        %832 = vmatmul.mubr.bf16.gmra.mxu0 %v706
        %v833 = vpop.f32.mrf.mxu0
        %v834 = vadd.f32 %v733, %v833
        %v835 = vpop.f32.mrf.mxu0
        %v836 = vpop.f32.mrf.mxu0
        %v837 = vadd.f32 %v733, %v836
        %v838 = vpop.f32.mrf.mxu0
        %839 = vmatprep.mubr.bf16.mxu0 0
        %840 = vmatmul.mubr.bf16.gmra.mxu0 %v707
        %v841 = vpop.f32.mrf.mxu0
        %v842 = vadd.f32 %v733, %v841
        %v843 = vpop.f32.mrf.mxu0
        %v844 = vpop.f32.mrf.mxu0
        %v845 = vadd.f32 %v733, %v844
        %v846 = vpop.f32.mrf.mxu0
        %847 = vmatprep.mubr.bf16.mxu0 0
        %848 = vmatmul.mubr.bf16.gmra.mxu0 %v708
        %v849 = vpop.f32.mrf.mxu0
        %v850 = vadd.f32 %v733, %v849
        %v851 = vpop.f32.mrf.mxu0
        %v852 = vpop.f32.mrf.mxu0
        %v853 = vadd.f32 %v733, %v852
        %v854 = vpop.f32.mrf.mxu0
        %855 = vmatprep.mubr.bf16.mxu0 0
        %856 = vmatmul.mubr.bf16.gmra.mxu0 %v709
        %v857 = vpop.f32.mrf.mxu0
        %v858 = vadd.f32 %v733, %v857
        %v859 = vpop.f32.mrf.mxu0
        %v860 = vpop.f32.mrf.mxu0
        %v861 = vadd.f32 %v733, %v860
        %v862 = vpop.f32.mrf.mxu0
        %863 = vmatprep.mubr.bf16.mxu0 0
        %864 = vmatmul.mubr.bf16.gmra.mxu0 %v710
        %v865 = vpop.f32.mrf.mxu0
        %v866 = vadd.f32 %v733, %v865
        %v867 = vpop.f32.mrf.mxu0
        %v868 = vpop.f32.mrf.mxu0
        %v869 = vadd.f32 %v733, %v868
        %v870 = vpop.f32.mrf.mxu0
        %871 = vmatprep.mubr.bf16.mxu0 0
        %872 = vmatmul.mubr.bf16.gmra.mxu0 %v711
        %v873 = vpop.f32.mrf.mxu0
        %v874 = vadd.f32 %v733, %v873
        %v875 = vpop.f32.mrf.mxu0
        %v876 = vpop.f32.mrf.mxu0
        %v877 = vadd.f32 %v733, %v876
        %v878 = vpop.f32.mrf.mxu0
        %879 = vdwg.mxu0
        %vm880 = vcmp.gt.f32.partialorder %v818, 0.0
        %vm881 = vcmp.gt.f32.partialorder %v821, 0.0
        %vm882 = vcmp.gt.f32.partialorder %v826, 0.0
        %vm883 = vcmp.gt.f32.partialorder %v829, 0.0
        %vm884 = vcmp.gt.f32.partialorder %v834, 0.0
        %vm885 = vcmp.gt.f32.partialorder %v837, 0.0
        %vm886 = vcmp.gt.f32.partialorder %v842, 0.0
        %vm887 = vcmp.gt.f32.partialorder %v845, 0.0
        %vm888 = vcmp.gt.f32.partialorder %v850, 0.0
        %vm889 = vcmp.gt.f32.partialorder %v853, 0.0
        %vm890 = vcmp.gt.f32.partialorder %v858, 0.0
        %vm891 = vcmp.gt.f32.partialorder %v861, 0.0
        %vm892 = vcmp.gt.f32.partialorder %v866, 0.0
        %vm893 = vcmp.gt.f32.partialorder %v869, 0.0
        %vm894 = vcmp.gt.f32.partialorder %v874, 0.0
        %vm895 = vcmp.gt.f32.partialorder %v877, 0.0
        %v896 = vmul.f32 %v818, 0.01
        %v897 = vmul.f32 %v821, 0.01
        %v898 = vmul.f32 %v826, 0.01
        %v899 = vmul.f32 %v829, 0.01
        %v900 = vmul.f32 %v834, 0.01
        %v901 = vmul.f32 %v837, 0.01
        %v902 = vmul.f32 %v842, 0.01
        %v903 = vmul.f32 %v845, 0.01
        %v904 = vmul.f32 %v850, 0.01
        %v905 = vmul.f32 %v853, 0.01
        %v906 = vmul.f32 %v858, 0.01
        %v907 = vmul.f32 %v861, 0.01
        %v908 = vmul.f32 %v866, 0.01
        %v909 = vmul.f32 %v869, 0.01
        %v910 = vmul.f32 %v874, 0.01
        %v911 = vmul.f32 %v877, 0.01
        %v912 = vsel %vm880, %v818, %v896
        %v913 = vsel %vm881, %v821, %v897
        %v914 = vsel %vm882, %v826, %v898
        %v915 = vsel %vm883, %v829, %v899
        %v916 = vsel %vm884, %v834, %v900
        %v917 = vsel %vm885, %v837, %v901
        %v918 = vsel %vm886, %v842, %v902
        %v919 = vsel %vm887, %v845, %v903
        %v920 = vsel %vm888, %v850, %v904
        %v921 = vsel %vm889, %v853, %v905
        %v922 = vsel %vm890, %v858, %v906
        %v923 = vsel %vm891, %v861, %v907
        %v924 = vsel %vm892, %v866, %v908
        %v925 = vsel %vm893, %v869, %v909
        %v926 = vsel %vm894, %v874, %v910
        %v927 = vsel %vm895, %v877, %v911
        %v928 = vpack.c.bf16 %v913, %v912
        %v929 = vpack.c.bf16 %v915, %v914
        %v930 = vpack.c.bf16 %v917, %v916
        %v931 = vpack.c.bf16 %v919, %v918
        %v932 = vpack.c.bf16 %v921, %v920
        %v933 = vpack.c.bf16 %v923, %v922
        %v934 = vpack.c.bf16 %v925, %v924
        %v935 = vpack.c.bf16 %v927, %v926
        %v944 = vunpack.c.l.b16 %v928
        %v945 = vunpack.c.h.b16 %v928
        %v946 = vunpack.c.l.b16 %v929
        %v947 = vunpack.c.h.b16 %v929
        %v948 = vunpack.c.l.b16 %v930
        %v949 = vunpack.c.h.b16 %v930
        %v950 = vunpack.c.l.b16 %v931
        %v951 = vunpack.c.h.b16 %v931
        %v952 = vunpack.c.l.b16 %v932
        %v953 = vunpack.c.h.b16 %v932
        %v954 = vunpack.c.l.b16 %v933
        %v955 = vunpack.c.h.b16 %v933
        %v956 = vunpack.c.l.b16 %v934
        %v957 = vunpack.c.h.b16 %v934
        %v958 = vunpack.c.l.b16 %v935
        %v959 = vunpack.c.h.b16 %v935
        %v960 = vpack.c.b16 %v944, %v944
        %v961 = vpack.c.b16 %v945, %v945
        %v962 = vpack.c.b16 %v946, %v946
        %v963 = vpack.c.b16 %v947, %v947
        %v964 = vpack.c.b16 %v948, %v948
        %v965 = vpack.c.b16 %v949, %v949
        %v966 = vpack.c.b16 %v950, %v950
        %v967 = vpack.c.b16 %v951, %v951
        %v968 = vpack.c.b16 %v952, %v952
        %v969 = vpack.c.b16 %v953, %v953
        %v970 = vpack.c.b16 %v954, %v954
        %v971 = vpack.c.b16 %v955, %v955
        %v972 = vpack.c.b16 %v956, %v956
        %v973 = vpack.c.b16 %v957, %v957
        %v974 = vpack.c.b16 %v958, %v958
        %v975 = vpack.c.b16 %v959, %v959
        %992 = vst [vmem:[#allocation2] sm:$0xf] %v960
        %993 = vst [vmem:[#allocation2 + $0x8] sm:$0xf] %v961
        %994 = vst [vmem:[#allocation2 + $0x10] sm:$0xf] %v962
        %995 = vst [vmem:[#allocation2 + $0x18] sm:$0xf] %v963
        %996 = vst [vmem:[#allocation2 + $0x20] sm:$0xf] %v964
        %997 = vst [vmem:[#allocation2 + $0x28] sm:$0xf] %v965
        %998 = vst [vmem:[#allocation2 + $0x30] sm:$0xf] %v966
        %999 = vst [vmem:[#allocation2 + $0x38] sm:$0xf] %v967
        %1000 = vst [vmem:[#allocation2 + $0x40] sm:$0xf] %v968
        %1001 = vst [vmem:[#allocation2 + $0x48] sm:$0xf] %v969
        %1002 = vst [vmem:[#allocation2 + $0x50] sm:$0xf] %v970
        %1003 = vst [vmem:[#allocation2 + $0x58] sm:$0xf] %v971
        %1004 = vst [vmem:[#allocation2 + $0x60] sm:$0xf] %v972
        %1005 = vst [vmem:[#allocation2 + $0x68] sm:$0xf] %v973
        %1006 = vst [vmem:[#allocation2 + $0x70] sm:$0xf] %v974
        %1007 = vst [vmem:[#allocation2 + $0x78] sm:$0xf] %v975
        %v1008 = vpack.c.bf16 %v496, %v495
        %v1009 = vpack.c.bf16 %v498, %v497
        %v1010 = vpack.c.bf16 %v500, %v499
        %v1011 = vpack.c.bf16 %v502, %v501
        %v1012 = vpack.c.bf16 %v504, %v503
        %v1013 = vpack.c.bf16 %v506, %v505
        %v1014 = vpack.c.bf16 %v508, %v507
        %v1015 = vpack.c.bf16 %v510, %v509
        %v1024 = vunpack.c.l.b16 %v1008
        %v1025 = vunpack.c.h.b16 %v1008
        %v1026 = vunpack.c.l.b16 %v1009
        %v1027 = vunpack.c.h.b16 %v1009
        %v1028 = vunpack.c.l.b16 %v1010
        %v1029 = vunpack.c.h.b16 %v1010
        %v1030 = vunpack.c.l.b16 %v1011
        %v1031 = vunpack.c.h.b16 %v1011
        %v1032 = vunpack.c.l.b16 %v1012
        %v1033 = vunpack.c.h.b16 %v1012
        %v1034 = vunpack.c.l.b16 %v1013
        %v1035 = vunpack.c.h.b16 %v1013
        %v1036 = vunpack.c.l.b16 %v1014
        %v1037 = vunpack.c.h.b16 %v1014
        %v1038 = vunpack.c.l.b16 %v1015
        %v1039 = vunpack.c.h.b16 %v1015
        %v1040 = vpack.c.b16 %v1024, %v1024
        %v1041 = vpack.c.b16 %v1025, %v1025
        %v1042 = vpack.c.b16 %v1026, %v1026
        %v1043 = vpack.c.b16 %v1027, %v1027
        %v1044 = vpack.c.b16 %v1028, %v1028
        %v1045 = vpack.c.b16 %v1029, %v1029
        %v1046 = vpack.c.b16 %v1030, %v1030
        %v1047 = vpack.c.b16 %v1031, %v1031
        %v1048 = vpack.c.b16 %v1032, %v1032
        %v1049 = vpack.c.b16 %v1033, %v1033
        %v1050 = vpack.c.b16 %v1034, %v1034
        %v1051 = vpack.c.b16 %v1035, %v1035
        %v1052 = vpack.c.b16 %v1036, %v1036
        %v1053 = vpack.c.b16 %v1037, %v1037
        %v1054 = vpack.c.b16 %v1038, %v1038
        %v1055 = vpack.c.b16 %v1039, %v1039
        %1072 = vst [vmem:[#allocation2 + $0x4] sm:$0xf] %v1040
        %1073 = vst [vmem:[#allocation2 + $0xc] sm:$0xf] %v1041
        %1074 = vst [vmem:[#allocation2 + $0x14] sm:$0xf] %v1042
        %1075 = vst [vmem:[#allocation2 + $0x1c] sm:$0xf] %v1043
        %1076 = vst [vmem:[#allocation2 + $0x24] sm:$0xf] %v1044
        %1077 = vst [vmem:[#allocation2 + $0x2c] sm:$0xf] %v1045
        %1078 = vst [vmem:[#allocation2 + $0x34] sm:$0xf] %v1046
        %1079 = vst [vmem:[#allocation2 + $0x3c] sm:$0xf] %v1047
        %1080 = vst [vmem:[#allocation2 + $0x44] sm:$0xf] %v1048
        %1081 = vst [vmem:[#allocation2 + $0x4c] sm:$0xf] %v1049
        %1082 = vst [vmem:[#allocation2 + $0x54] sm:$0xf] %v1050
        %1083 = vst [vmem:[#allocation2 + $0x5c] sm:$0xf] %v1051
        %1084 = vst [vmem:[#allocation2 + $0x64] sm:$0xf] %v1052
        %1085 = vst [vmem:[#allocation2 + $0x6c] sm:$0xf] %v1053
        %1086 = vst [vmem:[#allocation2 + $0x74] sm:$0xf] %v1054
        %1087 = vst [vmem:[#allocation2 + $0x7c] sm:$0xf] %v1055
        %v1088 = vld [vmem:[#allocation2] sm:$0xff]
        %v1089 = vld [vmem:[#allocation2 + $0x8] sm:$0xff]
        %v1090 = vld [vmem:[#allocation2 + $0x10] sm:$0xff]
        %v1091 = vld [vmem:[#allocation2 + $0x18] sm:$0xff]
        %v1092 = vld [vmem:[#allocation2 + $0x20] sm:$0xff]
        %v1093 = vld [vmem:[#allocation2 + $0x28] sm:$0xff]
        %v1094 = vld [vmem:[#allocation2 + $0x30] sm:$0xff]
        %v1095 = vld [vmem:[#allocation2 + $0x38] sm:$0xff]
        %v1096 = vld [vmem:[#allocation2 + $0x40] sm:$0xff]
        %v1097 = vld [vmem:[#allocation2 + $0x48] sm:$0xff]
        %v1098 = vld [vmem:[#allocation2 + $0x50] sm:$0xff]
        %v1099 = vld [vmem:[#allocation2 + $0x58] sm:$0xff]
        %v1100 = vld [vmem:[#allocation2 + $0x60] sm:$0xff]
        %v1101 = vld [vmem:[#allocation2 + $0x68] sm:$0xff]
        %v1102 = vld [vmem:[#allocation2 + $0x70] sm:$0xff]
        %v1103 = vld [vmem:[#allocation2 + $0x78] sm:$0xff]
        %v1104 = vld [vmem:[#allocation5] sm:$0xff]
        %v1105 = vld [vmem:[#allocation5 + $0x8] sm:$0xff]
        %v1106 = vld [vmem:[#allocation5 + $0x10] sm:$0xff]
        %v1107 = vld [vmem:[#allocation5 + $0x18] sm:$0xff]
        %v1108 = vld [vmem:[#allocation5 + $0x20] sm:$0xff]
        %v1109 = vld [vmem:[#allocation5 + $0x28] sm:$0xff]
        %v1110 = vld [vmem:[#allocation5 + $0x30] sm:$0xff]
        %v1111 = vld [vmem:[#allocation5 + $0x38] sm:$0xff]
        %v1112 = vld [vmem:[#allocation5 + $0x40] sm:$0xff]
        %v1113 = vld [vmem:[#allocation5 + $0x48] sm:$0xff]
        %v1114 = vld [vmem:[#allocation5 + $0x50] sm:$0xff]
        %v1115 = vld [vmem:[#allocation5 + $0x58] sm:$0xff]
        %v1116 = vld [vmem:[#allocation5 + $0x60] sm:$0xff]
        %v1117 = vld [vmem:[#allocation5 + $0x68] sm:$0xff]
        %v1118 = vld [vmem:[#allocation5 + $0x70] sm:$0xff]
        %v1119 = vld [vmem:[#allocation5 + $0x78] sm:$0xff]
        %v1120 = vld [vmem:[#allocation5 + $0x80] sm:$0xff]
        %v1121 = vld [vmem:[#allocation5 + $0x88] sm:$0xff]
        %v1122 = vld [vmem:[#allocation5 + $0x90] sm:$0xff]
        %v1123 = vld [vmem:[#allocation5 + $0x98] sm:$0xff]
        %v1124 = vld [vmem:[#allocation5 + $0xa0] sm:$0xff]
        %v1125 = vld [vmem:[#allocation5 + $0xa8] sm:$0xff]
        %v1126 = vld [vmem:[#allocation5 + $0xb0] sm:$0xff]
        %v1127 = vld [vmem:[#allocation5 + $0xb8] sm:$0xff]
        %v1128 = vld [vmem:[#allocation5 + $0xc0] sm:$0xff]
        %v1129 = vld [vmem:[#allocation5 + $0xc8] sm:$0xff]
        %v1130 = vld [vmem:[#allocation5 + $0xd0] sm:$0xff]
        %v1131 = vld [vmem:[#allocation5 + $0xd8] sm:$0xff]
        %v1132 = vld [vmem:[#allocation5 + $0xe0] sm:$0xff]
        %v1133 = vld [vmem:[#allocation5 + $0xe8] sm:$0xff]
        %v1134 = vld [vmem:[#allocation5 + $0xf0] sm:$0xff]
        %v1135 = vld [vmem:[#allocation5 + $0xf8] sm:$0xff]
        %v1136 = vld [vmem:[#allocation5 + $0x100] sm:$0xff]
        %v1137 = vld [vmem:[#allocation5 + $0x108] sm:$0xff]
        %v1138 = vld [vmem:[#allocation5 + $0x110] sm:$0xff]
        %v1139 = vld [vmem:[#allocation5 + $0x118] sm:$0xff]
        %v1140 = vld [vmem:[#allocation5 + $0x120] sm:$0xff]
        %v1141 = vld [vmem:[#allocation5 + $0x128] sm:$0xff]
        %v1142 = vld [vmem:[#allocation5 + $0x130] sm:$0xff]
        %v1143 = vld [vmem:[#allocation5 + $0x138] sm:$0xff]
        %v1144 = vld [vmem:[#allocation5 + $0x140] sm:$0xff]
        %v1145 = vld [vmem:[#allocation5 + $0x148] sm:$0xff]
        %v1146 = vld [vmem:[#allocation5 + $0x150] sm:$0xff]
        %v1147 = vld [vmem:[#allocation5 + $0x158] sm:$0xff]
        %v1148 = vld [vmem:[#allocation5 + $0x160] sm:$0xff]
        %v1149 = vld [vmem:[#allocation5 + $0x168] sm:$0xff]
        %v1150 = vld [vmem:[#allocation5 + $0x170] sm:$0xff]
        %v1151 = vld [vmem:[#allocation5 + $0x178] sm:$0xff]
        %v1152 = vld [vmem:[#allocation5 + $0x180] sm:$0xff]
        %v1153 = vld [vmem:[#allocation5 + $0x188] sm:$0xff]
        %v1154 = vld [vmem:[#allocation5 + $0x190] sm:$0xff]
        %v1155 = vld [vmem:[#allocation5 + $0x198] sm:$0xff]
        %v1156 = vld [vmem:[#allocation5 + $0x1a0] sm:$0xff]
        %v1157 = vld [vmem:[#allocation5 + $0x1a8] sm:$0xff]
        %v1158 = vld [vmem:[#allocation5 + $0x1b0] sm:$0xff]
        %v1159 = vld [vmem:[#allocation5 + $0x1b8] sm:$0xff]
        %v1160 = vld [vmem:[#allocation5 + $0x1c0] sm:$0xff]
        %v1161 = vld [vmem:[#allocation5 + $0x1c8] sm:$0xff]
        %v1162 = vld [vmem:[#allocation5 + $0x1d0] sm:$0xff]
        %v1163 = vld [vmem:[#allocation5 + $0x1d8] sm:$0xff]
        %v1164 = vld [vmem:[#allocation5 + $0x1e0] sm:$0xff]
        %v1165 = vld [vmem:[#allocation5 + $0x1e8] sm:$0xff]
        %v1166 = vld [vmem:[#allocation5 + $0x1f0] sm:$0xff]
        %v1167 = vld [vmem:[#allocation5 + $0x1f8] sm:$0xff]
        %v1168 = vld [vmem:[%s7] sm:$0xf]
        %v1170 = vlaneseq
        %v1171 = vshrl.u32 %v1170, 7
        %v1172 = vsub.s32 0, %v1171
        %v1173 = vrot.slane %v1168, %v1172
        %v1174 = vlaneseq
        %v1175 = vshrl.u32 %v1174, 7
        %v1176 = vsub.s32 1, %v1175
        %v1177 = vrot.slane %v1168, %v1176
        %v1178 = vlaneseq
        %v1179 = vshrl.u32 %v1178, 7
        %v1180 = vsub.s32 2, %v1179
        %v1181 = vrot.slane %v1168, %v1180
        %v1182 = vlaneseq
        %v1183 = vshrl.u32 %v1182, 7
        %v1184 = vsub.s32 3, %v1183
        %v1185 = vrot.slane %v1168, %v1184
        %v1206 = vunpack.c.l.b16 %v1088
        %v1207 = vunpack.c.h.b16 %v1088
        %v1208 = vunpack.c.l.b16 %v1089
        %v1209 = vunpack.c.h.b16 %v1089
        %v1210 = vunpack.c.l.b16 %v1090
        %v1211 = vunpack.c.h.b16 %v1090
        %v1212 = vunpack.c.l.b16 %v1091
        %v1213 = vunpack.c.h.b16 %v1091
        %v1214 = vunpack.c.l.b16 %v1092
        %v1215 = vunpack.c.h.b16 %v1092
        %v1216 = vunpack.c.l.b16 %v1093
        %v1217 = vunpack.c.h.b16 %v1093
        %v1218 = vunpack.c.l.b16 %v1094
        %v1219 = vunpack.c.h.b16 %v1094
        %v1220 = vunpack.c.l.b16 %v1095
        %v1221 = vunpack.c.h.b16 %v1095
        %v1222 = vunpack.c.l.b16 %v1096
        %v1223 = vunpack.c.h.b16 %v1096
        %v1224 = vunpack.c.l.b16 %v1097
        %v1225 = vunpack.c.h.b16 %v1097
        %v1226 = vunpack.c.l.b16 %v1098
        %v1227 = vunpack.c.h.b16 %v1098
        %v1228 = vunpack.c.l.b16 %v1099
        %v1229 = vunpack.c.h.b16 %v1099
        %v1230 = vunpack.c.l.b16 %v1100
        %v1231 = vunpack.c.h.b16 %v1100
        %v1232 = vunpack.c.l.b16 %v1101
        %v1233 = vunpack.c.h.b16 %v1101
        %v1234 = vunpack.c.l.b16 %v1102
        %v1235 = vunpack.c.h.b16 %v1102
        %v1236 = vunpack.c.l.b16 %v1103
        %v1237 = vunpack.c.h.b16 %v1103
        %v1238 = vpack.c.b16 %v1208, %v1206
        %v1239 = vpack.c.b16 %v1209, %v1207
        %v1240 = vpack.c.b16 %v1212, %v1210
        %v1241 = vpack.c.b16 %v1213, %v1211
        %v1242 = vpack.c.b16 %v1216, %v1214
        %v1243 = vpack.c.b16 %v1217, %v1215
        %v1244 = vpack.c.b16 %v1220, %v1218
        %v1245 = vpack.c.b16 %v1221, %v1219
        %v1246 = vpack.c.b16 %v1224, %v1222
        %v1247 = vpack.c.b16 %v1225, %v1223
        %v1248 = vpack.c.b16 %v1228, %v1226
        %v1249 = vpack.c.b16 %v1229, %v1227
        %v1250 = vpack.c.b16 %v1232, %v1230
        %v1251 = vpack.c.b16 %v1233, %v1231
        %v1252 = vpack.c.b16 %v1236, %v1234
        %v1253 = vpack.c.b16 %v1237, %v1235
        %v1334 = vunpack.c.l.b16 %v1104
        %v1335 = vunpack.c.h.b16 %v1104
        %v1336 = vunpack.c.l.b16 %v1105
        %v1337 = vunpack.c.h.b16 %v1105
        %v1338 = vunpack.c.l.b16 %v1106
        %v1339 = vunpack.c.h.b16 %v1106
        %v1340 = vunpack.c.l.b16 %v1107
        %v1341 = vunpack.c.h.b16 %v1107
        %v1342 = vunpack.c.l.b16 %v1108
        %v1343 = vunpack.c.h.b16 %v1108
        %v1344 = vunpack.c.l.b16 %v1109
        %v1345 = vunpack.c.h.b16 %v1109
        %v1346 = vunpack.c.l.b16 %v1110
        %v1347 = vunpack.c.h.b16 %v1110
        %v1348 = vunpack.c.l.b16 %v1111
        %v1349 = vunpack.c.h.b16 %v1111
        %v1350 = vunpack.c.l.b16 %v1112
        %v1351 = vunpack.c.h.b16 %v1112
        %v1352 = vunpack.c.l.b16 %v1113
        %v1353 = vunpack.c.h.b16 %v1113
        %v1354 = vunpack.c.l.b16 %v1114
        %v1355 = vunpack.c.h.b16 %v1114
        %v1356 = vunpack.c.l.b16 %v1115
        %v1357 = vunpack.c.h.b16 %v1115
        %v1358 = vunpack.c.l.b16 %v1116
        %v1359 = vunpack.c.h.b16 %v1116
        %v1360 = vunpack.c.l.b16 %v1117
        %v1361 = vunpack.c.h.b16 %v1117
        %v1362 = vunpack.c.l.b16 %v1118
        %v1363 = vunpack.c.h.b16 %v1118
        %v1364 = vunpack.c.l.b16 %v1119
        %v1365 = vunpack.c.h.b16 %v1119
        %v1366 = vunpack.c.l.b16 %v1120
        %v1367 = vunpack.c.h.b16 %v1120
        %v1368 = vunpack.c.l.b16 %v1121
        %v1369 = vunpack.c.h.b16 %v1121
        %v1370 = vunpack.c.l.b16 %v1122
        %v1371 = vunpack.c.h.b16 %v1122
        %v1372 = vunpack.c.l.b16 %v1123
        %v1373 = vunpack.c.h.b16 %v1123
        %v1374 = vunpack.c.l.b16 %v1124
        %v1375 = vunpack.c.h.b16 %v1124
        %v1376 = vunpack.c.l.b16 %v1125
        %v1377 = vunpack.c.h.b16 %v1125
        %v1378 = vunpack.c.l.b16 %v1126
        %v1379 = vunpack.c.h.b16 %v1126
        %v1380 = vunpack.c.l.b16 %v1127
        %v1381 = vunpack.c.h.b16 %v1127
        %v1382 = vunpack.c.l.b16 %v1128
        %v1383 = vunpack.c.h.b16 %v1128
        %v1384 = vunpack.c.l.b16 %v1129
        %v1385 = vunpack.c.h.b16 %v1129
        %v1386 = vunpack.c.l.b16 %v1130
        %v1387 = vunpack.c.h.b16 %v1130
        %v1388 = vunpack.c.l.b16 %v1131
        %v1389 = vunpack.c.h.b16 %v1131
        %v1390 = vunpack.c.l.b16 %v1132
        %v1391 = vunpack.c.h.b16 %v1132
        %v1392 = vunpack.c.l.b16 %v1133
        %v1393 = vunpack.c.h.b16 %v1133
        %v1394 = vunpack.c.l.b16 %v1134
        %v1395 = vunpack.c.h.b16 %v1134
        %v1396 = vunpack.c.l.b16 %v1135
        %v1397 = vunpack.c.h.b16 %v1135
        %v1398 = vunpack.c.l.b16 %v1136
        %v1399 = vunpack.c.h.b16 %v1136
        %v1400 = vunpack.c.l.b16 %v1137
        %v1401 = vunpack.c.h.b16 %v1137
        %v1402 = vunpack.c.l.b16 %v1138
        %v1403 = vunpack.c.h.b16 %v1138
        %v1404 = vunpack.c.l.b16 %v1139
        %v1405 = vunpack.c.h.b16 %v1139
        %v1406 = vunpack.c.l.b16 %v1140
        %v1407 = vunpack.c.h.b16 %v1140
        %v1408 = vunpack.c.l.b16 %v1141
        %v1409 = vunpack.c.h.b16 %v1141
        %v1410 = vunpack.c.l.b16 %v1142
        %v1411 = vunpack.c.h.b16 %v1142
        %v1412 = vunpack.c.l.b16 %v1143
        %v1413 = vunpack.c.h.b16 %v1143
        %v1414 = vunpack.c.l.b16 %v1144
        %v1415 = vunpack.c.h.b16 %v1144
        %v1416 = vunpack.c.l.b16 %v1145
        %v1417 = vunpack.c.h.b16 %v1145
        %v1418 = vunpack.c.l.b16 %v1146
        %v1419 = vunpack.c.h.b16 %v1146
        %v1420 = vunpack.c.l.b16 %v1147
        %v1421 = vunpack.c.h.b16 %v1147
        %v1422 = vunpack.c.l.b16 %v1148
        %v1423 = vunpack.c.h.b16 %v1148
        %v1424 = vunpack.c.l.b16 %v1149
        %v1425 = vunpack.c.h.b16 %v1149
        %v1426 = vunpack.c.l.b16 %v1150
        %v1427 = vunpack.c.h.b16 %v1150
        %v1428 = vunpack.c.l.b16 %v1151
        %v1429 = vunpack.c.h.b16 %v1151
        %v1430 = vunpack.c.l.b16 %v1152
        %v1431 = vunpack.c.h.b16 %v1152
        %v1432 = vunpack.c.l.b16 %v1153
        %v1433 = vunpack.c.h.b16 %v1153
        %v1434 = vunpack.c.l.b16 %v1154
        %v1435 = vunpack.c.h.b16 %v1154
        %v1436 = vunpack.c.l.b16 %v1155
        %v1437 = vunpack.c.h.b16 %v1155
        %v1438 = vunpack.c.l.b16 %v1156
        %v1439 = vunpack.c.h.b16 %v1156
        %v1440 = vunpack.c.l.b16 %v1157
        %v1441 = vunpack.c.h.b16 %v1157
        %v1442 = vunpack.c.l.b16 %v1158
        %v1443 = vunpack.c.h.b16 %v1158
        %v1444 = vunpack.c.l.b16 %v1159
        %v1445 = vunpack.c.h.b16 %v1159
        %v1446 = vunpack.c.l.b16 %v1160
        %v1447 = vunpack.c.h.b16 %v1160
        %v1448 = vunpack.c.l.b16 %v1161
        %v1449 = vunpack.c.h.b16 %v1161
        %v1450 = vunpack.c.l.b16 %v1162
        %v1451 = vunpack.c.h.b16 %v1162
        %v1452 = vunpack.c.l.b16 %v1163
        %v1453 = vunpack.c.h.b16 %v1163
        %v1454 = vunpack.c.l.b16 %v1164
        %v1455 = vunpack.c.h.b16 %v1164
        %v1456 = vunpack.c.l.b16 %v1165
        %v1457 = vunpack.c.h.b16 %v1165
        %v1458 = vunpack.c.l.b16 %v1166
        %v1459 = vunpack.c.h.b16 %v1166
        %v1460 = vunpack.c.l.b16 %v1167
        %v1461 = vunpack.c.h.b16 %v1167
        %v1462 = vpack.c.b16 %v1338, %v1334
        %v1463 = vpack.c.b16 %v1339, %v1335
        %v1464 = vpack.c.b16 %v1340, %v1336
        %v1465 = vpack.c.b16 %v1341, %v1337
        %v1466 = vpack.c.b16 %v1346, %v1342
        %v1467 = vpack.c.b16 %v1347, %v1343
        %v1468 = vpack.c.b16 %v1348, %v1344
        %v1469 = vpack.c.b16 %v1349, %v1345
        %v1470 = vpack.c.b16 %v1354, %v1350
        %v1471 = vpack.c.b16 %v1355, %v1351
        %v1472 = vpack.c.b16 %v1356, %v1352
        %v1473 = vpack.c.b16 %v1357, %v1353
        %v1474 = vpack.c.b16 %v1362, %v1358
        %v1475 = vpack.c.b16 %v1363, %v1359
        %v1476 = vpack.c.b16 %v1364, %v1360
        %v1477 = vpack.c.b16 %v1365, %v1361
        %v1478 = vpack.c.b16 %v1370, %v1366
        %v1479 = vpack.c.b16 %v1371, %v1367
        %v1480 = vpack.c.b16 %v1372, %v1368
        %v1481 = vpack.c.b16 %v1373, %v1369
        %v1482 = vpack.c.b16 %v1378, %v1374
        %v1483 = vpack.c.b16 %v1379, %v1375
        %v1484 = vpack.c.b16 %v1380, %v1376
        %v1485 = vpack.c.b16 %v1381, %v1377
        %v1486 = vpack.c.b16 %v1386, %v1382
        %v1487 = vpack.c.b16 %v1387, %v1383
        %v1488 = vpack.c.b16 %v1388, %v1384
        %v1489 = vpack.c.b16 %v1389, %v1385
        %v1490 = vpack.c.b16 %v1394, %v1390
        %v1491 = vpack.c.b16 %v1395, %v1391
        %v1492 = vpack.c.b16 %v1396, %v1392
        %v1493 = vpack.c.b16 %v1397, %v1393
        %v1494 = vpack.c.b16 %v1402, %v1398
        %v1495 = vpack.c.b16 %v1403, %v1399
        %v1496 = vpack.c.b16 %v1404, %v1400
        %v1497 = vpack.c.b16 %v1405, %v1401
        %v1498 = vpack.c.b16 %v1410, %v1406
        %v1499 = vpack.c.b16 %v1411, %v1407
        %v1500 = vpack.c.b16 %v1412, %v1408
        %v1501 = vpack.c.b16 %v1413, %v1409
        %v1502 = vpack.c.b16 %v1418, %v1414
        %v1503 = vpack.c.b16 %v1419, %v1415
        %v1504 = vpack.c.b16 %v1420, %v1416
        %v1505 = vpack.c.b16 %v1421, %v1417
        %v1506 = vpack.c.b16 %v1426, %v1422
        %v1507 = vpack.c.b16 %v1427, %v1423
        %v1508 = vpack.c.b16 %v1428, %v1424
        %v1509 = vpack.c.b16 %v1429, %v1425
        %v1510 = vpack.c.b16 %v1434, %v1430
        %v1511 = vpack.c.b16 %v1435, %v1431
        %v1512 = vpack.c.b16 %v1436, %v1432
        %v1513 = vpack.c.b16 %v1437, %v1433
        %v1514 = vpack.c.b16 %v1442, %v1438
        %v1515 = vpack.c.b16 %v1443, %v1439
        %v1516 = vpack.c.b16 %v1444, %v1440
        %v1517 = vpack.c.b16 %v1445, %v1441
        %v1518 = vpack.c.b16 %v1450, %v1446
        %v1519 = vpack.c.b16 %v1451, %v1447
        %v1520 = vpack.c.b16 %v1452, %v1448
        %v1521 = vpack.c.b16 %v1453, %v1449
        %v1522 = vpack.c.b16 %v1458, %v1454
        %v1523 = vpack.c.b16 %v1459, %v1455
        %v1524 = vpack.c.b16 %v1460, %v1456
        %v1525 = vpack.c.b16 %v1461, %v1457
        %1590 = vmatprep.subr.bf16.mxu0 %v1491
        %1591 = vmatpush1.bf16.msra.mxu0 %v1490
        %1592 = vmatprep.subr.bf16.mxu0 %v1487
        %1593 = vmatpush1.bf16.msra.mxu0 %v1486
        %1594 = vmatprep.subr.bf16.mxu0 %v1483
        %1595 = vmatpush1.bf16.msra.mxu0 %v1482
        %1596 = vmatprep.subr.bf16.mxu0 %v1479
        %1597 = vmatpush1.bf16.msra.mxu0 %v1478
        %1598 = vmatprep.subr.bf16.mxu0 %v1475
        %1599 = vmatpush1.bf16.msra.mxu0 %v1474
        %1600 = vmatprep.subr.bf16.mxu0 %v1471
        %1601 = vmatpush1.bf16.msra.mxu0 %v1470
        %1602 = vmatprep.subr.bf16.mxu0 %v1467
        %1603 = vmatpush1.bf16.msra.mxu0 %v1466
        %1604 = vmatprep.subr.bf16.mxu0 %v1463
        %1605 = vmatpush1.bf16.msra.mxu0 %v1462
        %1606 = vmatprep.subr.bf16.mxu0 %v1523
        %1607 = vmatpush2.bf16.msra.mxu0 %v1522
        %1608 = vmatprep.subr.bf16.mxu0 %v1519
        %1609 = vmatpush2.bf16.msra.mxu0 %v1518
        %1610 = vmatprep.subr.bf16.mxu0 %v1515
        %1611 = vmatpush2.bf16.msra.mxu0 %v1514
        %1612 = vmatprep.subr.bf16.mxu0 %v1511
        %1613 = vmatpush2.bf16.msra.mxu0 %v1510
        %1614 = vmatprep.subr.bf16.mxu0 %v1507
        %1615 = vmatpush2.bf16.msra.mxu0 %v1506
        %1616 = vmatprep.subr.bf16.mxu0 %v1503
        %1617 = vmatpush2.bf16.msra.mxu0 %v1502
        %1618 = vmatprep.subr.bf16.mxu0 %v1499
        %1619 = vmatpush2.bf16.msra.mxu0 %v1498
        %1620 = vmatprep.subr.bf16.mxu0 %v1495
        %1621 = vmatpush2.bf16.msra.mxu0 %v1494
        %1622 = vmatprep.mubr.bf16.mxu0 %v1239
        %1623 = vmatmul.mubr.bf16.gmra.mxu0 %v1238
        %v1624 = vpop.f32.mrf.mxu0
        %v1625 = vadd.f32 %v1173, %v1624
        %v1626 = vpop.f32.mrf.mxu0
        %v1627 = vadd.f32 %v1177, %v1626
        %v1628 = vpop.f32.mrf.mxu0
        %v1629 = vadd.f32 %v1173, %v1628
        %v1630 = vpop.f32.mrf.mxu0
        %v1631 = vadd.f32 %v1177, %v1630
        %1632 = vmatprep.mubr.bf16.mxu0 %v1241
        %1633 = vmatmul.mubr.bf16.gmra.mxu0 %v1240
        %v1634 = vpop.f32.mrf.mxu0
        %v1635 = vadd.f32 %v1173, %v1634
        %v1636 = vpop.f32.mrf.mxu0
        %v1637 = vadd.f32 %v1177, %v1636
        %v1638 = vpop.f32.mrf.mxu0
        %v1639 = vadd.f32 %v1173, %v1638
        %v1640 = vpop.f32.mrf.mxu0
        %v1641 = vadd.f32 %v1177, %v1640
        %1642 = vmatprep.mubr.bf16.mxu0 %v1243
        %1643 = vmatmul.mubr.bf16.gmra.mxu0 %v1242
        %v1644 = vpop.f32.mrf.mxu0
        %v1645 = vadd.f32 %v1173, %v1644
        %v1646 = vpop.f32.mrf.mxu0
        %v1647 = vadd.f32 %v1177, %v1646
        %v1648 = vpop.f32.mrf.mxu0
        %v1649 = vadd.f32 %v1173, %v1648
        %v1650 = vpop.f32.mrf.mxu0
        %v1651 = vadd.f32 %v1177, %v1650
        %1652 = vmatprep.mubr.bf16.mxu0 %v1245
        %1653 = vmatmul.mubr.bf16.gmra.mxu0 %v1244
        %v1654 = vpop.f32.mrf.mxu0
        %v1655 = vadd.f32 %v1173, %v1654
        %v1656 = vpop.f32.mrf.mxu0
        %v1657 = vadd.f32 %v1177, %v1656
        %v1658 = vpop.f32.mrf.mxu0
        %v1659 = vadd.f32 %v1173, %v1658
        %v1660 = vpop.f32.mrf.mxu0
        %v1661 = vadd.f32 %v1177, %v1660
        %1662 = vmatprep.mubr.bf16.mxu0 %v1247
        %1663 = vmatmul.mubr.bf16.gmra.mxu0 %v1246
        %v1664 = vpop.f32.mrf.mxu0
        %v1665 = vadd.f32 %v1173, %v1664
        %v1666 = vpop.f32.mrf.mxu0
        %v1667 = vadd.f32 %v1177, %v1666
        %v1668 = vpop.f32.mrf.mxu0
        %v1669 = vadd.f32 %v1173, %v1668
        %v1670 = vpop.f32.mrf.mxu0
        %v1671 = vadd.f32 %v1177, %v1670
        %1672 = vmatprep.mubr.bf16.mxu0 %v1249
        %1673 = vmatmul.mubr.bf16.gmra.mxu0 %v1248
        %v1674 = vpop.f32.mrf.mxu0
        %v1675 = vadd.f32 %v1173, %v1674
        %v1676 = vpop.f32.mrf.mxu0
        %v1677 = vadd.f32 %v1177, %v1676
        %v1678 = vpop.f32.mrf.mxu0
        %v1679 = vadd.f32 %v1173, %v1678
        %v1680 = vpop.f32.mrf.mxu0
        %v1681 = vadd.f32 %v1177, %v1680
        %1682 = vmatprep.mubr.bf16.mxu0 %v1251
        %1683 = vmatmul.mubr.bf16.gmra.mxu0 %v1250
        %v1684 = vpop.f32.mrf.mxu0
        %v1685 = vadd.f32 %v1173, %v1684
        %v1686 = vpop.f32.mrf.mxu0
        %v1687 = vadd.f32 %v1177, %v1686
        %v1688 = vpop.f32.mrf.mxu0
        %v1689 = vadd.f32 %v1173, %v1688
        %v1690 = vpop.f32.mrf.mxu0
        %v1691 = vadd.f32 %v1177, %v1690
        %1692 = vmatprep.mubr.bf16.mxu0 %v1253
        %1693 = vmatmul.mubr.bf16.gmra.mxu0 %v1252
        %v1694 = vpop.f32.mrf.mxu0
        %v1695 = vadd.f32 %v1173, %v1694
        %v1696 = vpop.f32.mrf.mxu0
        %v1697 = vadd.f32 %v1177, %v1696
        %v1698 = vpop.f32.mrf.mxu0
        %v1699 = vadd.f32 %v1173, %v1698
        %v1700 = vpop.f32.mrf.mxu0
        %v1701 = vadd.f32 %v1177, %v1700
        %1702 = vdwg.mxu0
        %1703 = vmatprep.subr.bf16.mxu0 %v1493
        %1704 = vmatpush1.bf16.msra.mxu0 %v1492
        %1705 = vmatprep.subr.bf16.mxu0 %v1489
        %1706 = vmatpush1.bf16.msra.mxu0 %v1488
        %1707 = vmatprep.subr.bf16.mxu0 %v1485
        %1708 = vmatpush1.bf16.msra.mxu0 %v1484
        %1709 = vmatprep.subr.bf16.mxu0 %v1481
        %1710 = vmatpush1.bf16.msra.mxu0 %v1480
        %1711 = vmatprep.subr.bf16.mxu0 %v1477
        %1712 = vmatpush1.bf16.msra.mxu0 %v1476
        %1713 = vmatprep.subr.bf16.mxu0 %v1473
        %1714 = vmatpush1.bf16.msra.mxu0 %v1472
        %1715 = vmatprep.subr.bf16.mxu0 %v1469
        %1716 = vmatpush1.bf16.msra.mxu0 %v1468
        %1717 = vmatprep.subr.bf16.mxu0 %v1465
        %1718 = vmatpush1.bf16.msra.mxu0 %v1464
        %1719 = vmatprep.subr.bf16.mxu0 %v1525
        %1720 = vmatpush2.bf16.msra.mxu0 %v1524
        %1721 = vmatprep.subr.bf16.mxu0 %v1521
        %1722 = vmatpush2.bf16.msra.mxu0 %v1520
        %1723 = vmatprep.subr.bf16.mxu0 %v1517
        %1724 = vmatpush2.bf16.msra.mxu0 %v1516
        %1725 = vmatprep.subr.bf16.mxu0 %v1513
        %1726 = vmatpush2.bf16.msra.mxu0 %v1512
        %1727 = vmatprep.subr.bf16.mxu0 %v1509
        %1728 = vmatpush2.bf16.msra.mxu0 %v1508
        %1729 = vmatprep.subr.bf16.mxu0 %v1505
        %1730 = vmatpush2.bf16.msra.mxu0 %v1504
        %1731 = vmatprep.subr.bf16.mxu0 %v1501
        %1732 = vmatpush2.bf16.msra.mxu0 %v1500
        %1733 = vmatprep.subr.bf16.mxu0 %v1497
        %1734 = vmatpush2.bf16.msra.mxu0 %v1496
        %1735 = vmatprep.mubr.bf16.mxu0 %v1239
        %1736 = vmatmul.mubr.bf16.gmra.mxu0 %v1238
        %v1737 = vpop.f32.mrf.mxu0
        %v1738 = vadd.f32 %v1181, %v1737
        %v1739 = vpop.f32.mrf.mxu0
        %v1740 = vadd.f32 %v1185, %v1739
        %v1741 = vpop.f32.mrf.mxu0
        %v1742 = vadd.f32 %v1181, %v1741
        %v1743 = vpop.f32.mrf.mxu0
        %v1744 = vadd.f32 %v1185, %v1743
        %1745 = vmatprep.mubr.bf16.mxu0 %v1241
        %1746 = vmatmul.mubr.bf16.gmra.mxu0 %v1240
        %v1747 = vpop.f32.mrf.mxu0
        %v1748 = vadd.f32 %v1181, %v1747
        %v1749 = vpop.f32.mrf.mxu0
        %v1750 = vadd.f32 %v1185, %v1749
        %v1751 = vpop.f32.mrf.mxu0
        %v1752 = vadd.f32 %v1181, %v1751
        %v1753 = vpop.f32.mrf.mxu0
        %v1754 = vadd.f32 %v1185, %v1753
        %1755 = vmatprep.mubr.bf16.mxu0 %v1243
        %1756 = vmatmul.mubr.bf16.gmra.mxu0 %v1242
        %v1757 = vpop.f32.mrf.mxu0
        %v1758 = vadd.f32 %v1181, %v1757
        %v1759 = vpop.f32.mrf.mxu0
        %v1760 = vadd.f32 %v1185, %v1759
        %v1761 = vpop.f32.mrf.mxu0
        %v1762 = vadd.f32 %v1181, %v1761
        %v1763 = vpop.f32.mrf.mxu0
        %v1764 = vadd.f32 %v1185, %v1763
        %1765 = vmatprep.mubr.bf16.mxu0 %v1245
        %1766 = vmatmul.mubr.bf16.gmra.mxu0 %v1244
        %v1767 = vpop.f32.mrf.mxu0
        %v1768 = vadd.f32 %v1181, %v1767
        %v1769 = vpop.f32.mrf.mxu0
        %v1770 = vadd.f32 %v1185, %v1769
        %v1771 = vpop.f32.mrf.mxu0
        %v1772 = vadd.f32 %v1181, %v1771
        %v1773 = vpop.f32.mrf.mxu0
        %v1774 = vadd.f32 %v1185, %v1773
        %1775 = vmatprep.mubr.bf16.mxu0 %v1247
        %1776 = vmatmul.mubr.bf16.gmra.mxu0 %v1246
        %v1777 = vpop.f32.mrf.mxu0
        %v1778 = vadd.f32 %v1181, %v1777
        %v1779 = vpop.f32.mrf.mxu0
        %v1780 = vadd.f32 %v1185, %v1779
        %v1781 = vpop.f32.mrf.mxu0
        %v1782 = vadd.f32 %v1181, %v1781
        %v1783 = vpop.f32.mrf.mxu0
        %v1784 = vadd.f32 %v1185, %v1783
        %1785 = vmatprep.mubr.bf16.mxu0 %v1249
        %1786 = vmatmul.mubr.bf16.gmra.mxu0 %v1248
        %v1787 = vpop.f32.mrf.mxu0
        %v1788 = vadd.f32 %v1181, %v1787
        %v1789 = vpop.f32.mrf.mxu0
        %v1790 = vadd.f32 %v1185, %v1789
        %v1791 = vpop.f32.mrf.mxu0
        %v1792 = vadd.f32 %v1181, %v1791
        %v1793 = vpop.f32.mrf.mxu0
        %v1794 = vadd.f32 %v1185, %v1793
        %1795 = vmatprep.mubr.bf16.mxu0 %v1251
        %1796 = vmatmul.mubr.bf16.gmra.mxu0 %v1250
        %v1797 = vpop.f32.mrf.mxu0
        %v1798 = vadd.f32 %v1181, %v1797
        %v1799 = vpop.f32.mrf.mxu0
        %v1800 = vadd.f32 %v1185, %v1799
        %v1801 = vpop.f32.mrf.mxu0
        %v1802 = vadd.f32 %v1181, %v1801
        %v1803 = vpop.f32.mrf.mxu0
        %v1804 = vadd.f32 %v1185, %v1803
        %1805 = vmatprep.mubr.bf16.mxu0 %v1253
        %1806 = vmatmul.mubr.bf16.gmra.mxu0 %v1252
        %v1807 = vpop.f32.mrf.mxu0
        %v1808 = vadd.f32 %v1181, %v1807
        %v1809 = vpop.f32.mrf.mxu0
        %v1810 = vadd.f32 %v1185, %v1809
        %v1811 = vpop.f32.mrf.mxu0
        %v1812 = vadd.f32 %v1181, %v1811
        %v1813 = vpop.f32.mrf.mxu0
        %v1814 = vadd.f32 %v1185, %v1813
        %1815 = vdwg.mxu0
        %v1816 = vxor.u32 %v1625, 2147483648
        %v1817 = vxor.u32 %v1629, 2147483648
        %v1818 = vxor.u32 %v1635, 2147483648
        %v1819 = vxor.u32 %v1639, 2147483648
        %v1820 = vxor.u32 %v1645, 2147483648
        %v1821 = vxor.u32 %v1649, 2147483648
        %v1822 = vxor.u32 %v1655, 2147483648
        %v1823 = vxor.u32 %v1659, 2147483648
        %v1824 = vxor.u32 %v1665, 2147483648
        %v1825 = vxor.u32 %v1669, 2147483648
        %v1826 = vxor.u32 %v1675, 2147483648
        %v1827 = vxor.u32 %v1679, 2147483648
        %v1828 = vxor.u32 %v1685, 2147483648
        %v1829 = vxor.u32 %v1689, 2147483648
        %v1830 = vxor.u32 %v1695, 2147483648
        %v1831 = vxor.u32 %v1699, 2147483648
        %v1832 = vmul.f32 %v1816, 1.442695
        %v1833 = vpow.pop %v1832
        %v1834 = vmul.f32 %v1817, 1.442695
        %v1835 = vpow.pop %v1834
        %v1836 = vmul.f32 %v1818, 1.442695
        %v1837 = vpow.pop %v1836
        %v1838 = vmul.f32 %v1819, 1.442695
        %v1839 = vpow.pop %v1838
        %v1840 = vmul.f32 %v1820, 1.442695
        %v1841 = vpow.pop %v1840
        %v1842 = vmul.f32 %v1821, 1.442695
        %v1843 = vpow.pop %v1842
        %v1844 = vmul.f32 %v1822, 1.442695
        %v1845 = vpow.pop %v1844
        %v1846 = vmul.f32 %v1823, 1.442695
        %v1847 = vpow.pop %v1846
        %v1848 = vmul.f32 %v1824, 1.442695
        %v1849 = vpow.pop %v1848
        %v1850 = vmul.f32 %v1825, 1.442695
        %v1851 = vpow.pop %v1850
        %v1852 = vmul.f32 %v1826, 1.442695
        %v1853 = vpow.pop %v1852
        %v1854 = vmul.f32 %v1827, 1.442695
        %v1855 = vpow.pop %v1854
        %v1856 = vmul.f32 %v1828, 1.442695
        %v1857 = vpow.pop %v1856
        %v1858 = vmul.f32 %v1829, 1.442695
        %v1859 = vpow.pop %v1858
        %v1860 = vmul.f32 %v1830, 1.442695
        %v1861 = vpow.pop %v1860
        %v1862 = vmul.f32 %v1831, 1.442695
        %v1863 = vpow.pop %v1862
        %v1864 = vadd.f32 %v1833, 1.0
        %v1865 = vadd.f32 %v1835, 1.0
        %v1866 = vadd.f32 %v1837, 1.0
        %v1867 = vadd.f32 %v1839, 1.0
        %v1868 = vadd.f32 %v1841, 1.0
        %v1869 = vadd.f32 %v1843, 1.0
        %v1870 = vadd.f32 %v1845, 1.0
        %v1871 = vadd.f32 %v1847, 1.0
        %v1872 = vadd.f32 %v1849, 1.0
        %v1873 = vadd.f32 %v1851, 1.0
        %v1874 = vadd.f32 %v1853, 1.0
        %v1875 = vadd.f32 %v1855, 1.0
        %v1876 = vadd.f32 %v1857, 1.0
        %v1877 = vadd.f32 %v1859, 1.0
        %v1878 = vadd.f32 %v1861, 1.0
        %v1879 = vadd.f32 %v1863, 1.0
        %v1880 = vrcp.pop %v1864
        %v1881 = vmul.f32 1.0, %v1880
        %v1882 = vrcp.pop %v1865
        %v1883 = vmul.f32 1.0, %v1882
        %v1884 = vrcp.pop %v1866
        %v1885 = vmul.f32 1.0, %v1884
        %v1886 = vrcp.pop %v1867
        %v1887 = vmul.f32 1.0, %v1886
        %v1888 = vrcp.pop %v1868
        %v1889 = vmul.f32 1.0, %v1888
        %v1890 = vrcp.pop %v1869
        %v1891 = vmul.f32 1.0, %v1890
        %v1892 = vrcp.pop %v1870
        %v1893 = vmul.f32 1.0, %v1892
        %v1894 = vrcp.pop %v1871
        %v1895 = vmul.f32 1.0, %v1894
        %v1896 = vrcp.pop %v1872
        %v1897 = vmul.f32 1.0, %v1896
        %v1898 = vrcp.pop %v1873
        %v1899 = vmul.f32 1.0, %v1898
        %v1900 = vrcp.pop %v1874
        %v1901 = vmul.f32 1.0, %v1900
        %v1902 = vrcp.pop %v1875
        %v1903 = vmul.f32 1.0, %v1902
        %v1904 = vrcp.pop %v1876
        %v1905 = vmul.f32 1.0, %v1904
        %v1906 = vrcp.pop %v1877
        %v1907 = vmul.f32 1.0, %v1906
        %v1908 = vrcp.pop %v1878
        %v1909 = vmul.f32 1.0, %v1908
        %v1910 = vrcp.pop %v1879
        %v1911 = vmul.f32 1.0, %v1910
        %v1912 = vxor.u32 %v1627, 2147483648
        %v1913 = vxor.u32 %v1631, 2147483648
        %v1914 = vxor.u32 %v1637, 2147483648
        %v1915 = vxor.u32 %v1641, 2147483648
        %v1916 = vxor.u32 %v1647, 2147483648
        %v1917 = vxor.u32 %v1651, 2147483648
        %v1918 = vxor.u32 %v1657, 2147483648
        %v1919 = vxor.u32 %v1661, 2147483648
        %v1920 = vxor.u32 %v1667, 2147483648
        %v1921 = vxor.u32 %v1671, 2147483648
        %v1922 = vxor.u32 %v1677, 2147483648
        %v1923 = vxor.u32 %v1681, 2147483648
        %v1924 = vxor.u32 %v1687, 2147483648
        %v1925 = vxor.u32 %v1691, 2147483648
        %v1926 = vxor.u32 %v1697, 2147483648
        %v1927 = vxor.u32 %v1701, 2147483648
        %v1928 = vmul.f32 %v1912, 1.442695
        %v1929 = vpow.pop %v1928
        %v1930 = vmul.f32 %v1913, 1.442695
        %v1931 = vpow.pop %v1930
        %v1932 = vmul.f32 %v1914, 1.442695
        %v1933 = vpow.pop %v1932
        %v1934 = vmul.f32 %v1915, 1.442695
        %v1935 = vpow.pop %v1934
        %v1936 = vmul.f32 %v1916, 1.442695
        %v1937 = vpow.pop %v1936
        %v1938 = vmul.f32 %v1917, 1.442695
        %v1939 = vpow.pop %v1938
        %v1940 = vmul.f32 %v1918, 1.442695
        %v1941 = vpow.pop %v1940
        %v1942 = vmul.f32 %v1919, 1.442695
        %v1943 = vpow.pop %v1942
        %v1944 = vmul.f32 %v1920, 1.442695
        %v1945 = vpow.pop %v1944
        %v1946 = vmul.f32 %v1921, 1.442695
        %v1947 = vpow.pop %v1946
        %v1948 = vmul.f32 %v1922, 1.442695
        %v1949 = vpow.pop %v1948
        %v1950 = vmul.f32 %v1923, 1.442695
        %v1951 = vpow.pop %v1950
        %v1952 = vmul.f32 %v1924, 1.442695
        %v1953 = vpow.pop %v1952
        %v1954 = vmul.f32 %v1925, 1.442695
        %v1955 = vpow.pop %v1954
        %v1956 = vmul.f32 %v1926, 1.442695
        %v1957 = vpow.pop %v1956
        %v1958 = vmul.f32 %v1927, 1.442695
        %v1959 = vpow.pop %v1958
        %v1960 = vadd.f32 %v1929, 1.0
        %v1961 = vadd.f32 %v1931, 1.0
        %v1962 = vadd.f32 %v1933, 1.0
        %v1963 = vadd.f32 %v1935, 1.0
        %v1964 = vadd.f32 %v1937, 1.0
        %v1965 = vadd.f32 %v1939, 1.0
        %v1966 = vadd.f32 %v1941, 1.0
        %v1967 = vadd.f32 %v1943, 1.0
        %v1968 = vadd.f32 %v1945, 1.0
        %v1969 = vadd.f32 %v1947, 1.0
        %v1970 = vadd.f32 %v1949, 1.0
        %v1971 = vadd.f32 %v1951, 1.0
        %v1972 = vadd.f32 %v1953, 1.0
        %v1973 = vadd.f32 %v1955, 1.0
        %v1974 = vadd.f32 %v1957, 1.0
        %v1975 = vadd.f32 %v1959, 1.0
        %v1976 = vrcp.pop %v1960
        %v1977 = vmul.f32 1.0, %v1976
        %v1978 = vrcp.pop %v1961
        %v1979 = vmul.f32 1.0, %v1978
        %v1980 = vrcp.pop %v1962
        %v1981 = vmul.f32 1.0, %v1980
        %v1982 = vrcp.pop %v1963
        %v1983 = vmul.f32 1.0, %v1982
        %v1984 = vrcp.pop %v1964
        %v1985 = vmul.f32 1.0, %v1984
        %v1986 = vrcp.pop %v1965
        %v1987 = vmul.f32 1.0, %v1986
        %v1988 = vrcp.pop %v1966
        %v1989 = vmul.f32 1.0, %v1988
        %v1990 = vrcp.pop %v1967
        %v1991 = vmul.f32 1.0, %v1990
        %v1992 = vrcp.pop %v1968
        %v1993 = vmul.f32 1.0, %v1992
        %v1994 = vrcp.pop %v1969
        %v1995 = vmul.f32 1.0, %v1994
        %v1996 = vrcp.pop %v1970
        %v1997 = vmul.f32 1.0, %v1996
        %v1998 = vrcp.pop %v1971
        %v1999 = vmul.f32 1.0, %v1998
        %v2000 = vrcp.pop %v1972
        %v2001 = vmul.f32 1.0, %v2000
        %v2002 = vrcp.pop %v1973
        %v2003 = vmul.f32 1.0, %v2002
        %v2004 = vrcp.pop %v1974
        %v2005 = vmul.f32 1.0, %v2004
        %v2006 = vrcp.pop %v1975
        %v2007 = vmul.f32 1.0, %v2006
        %v2008 = vmul.f32 %v1881, %v1740
        %v2009 = vmul.f32 %v1883, %v1744
        %v2010 = vmul.f32 %v1885, %v1750
        %v2011 = vmul.f32 %v1887, %v1754
        %v2012 = vmul.f32 %v1889, %v1760
        %v2013 = vmul.f32 %v1891, %v1764
        %v2014 = vmul.f32 %v1893, %v1770
        %v2015 = vmul.f32 %v1895, %v1774
        %v2016 = vmul.f32 %v1897, %v1780
        %v2017 = vmul.f32 %v1899, %v1784
        %v2018 = vmul.f32 %v1901, %v1790
        %v2019 = vmul.f32 %v1903, %v1794
        %v2020 = vmul.f32 %v1905, %v1800
        %v2021 = vmul.f32 %v1907, %v1804
        %v2022 = vmul.f32 %v1909, %v1810
        %v2023 = vmul.f32 %v1911, %v1814
        %v2024 = vadd.f32 %v1738, %v2008
        %v2025 = vadd.f32 %v1742, %v2009
        %v2026 = vadd.f32 %v1748, %v2010
        %v2027 = vadd.f32 %v1752, %v2011
        %v2028 = vadd.f32 %v1758, %v2012
        %v2029 = vadd.f32 %v1762, %v2013
        %v2030 = vadd.f32 %v1768, %v2014
        %v2031 = vadd.f32 %v1772, %v2015
        %v2032 = vadd.f32 %v1778, %v2016
        %v2033 = vadd.f32 %v1782, %v2017
        %v2034 = vadd.f32 %v1788, %v2018
        %v2035 = vadd.f32 %v1792, %v2019
        %v2036 = vadd.f32 %v1798, %v2020
        %v2037 = vadd.f32 %v1802, %v2021
        %v2038 = vadd.f32 %v1808, %v2022
        %v2039 = vadd.f32 %v1812, %v2023
        %v2040 = vtanh.pop %v2024
        %v2041 = vtanh.pop %v2025
        %v2042 = vtanh.pop %v2026
        %v2043 = vtanh.pop %v2027
        %v2044 = vtanh.pop %v2028
        %v2045 = vtanh.pop %v2029
        %v2046 = vtanh.pop %v2030
        %v2047 = vtanh.pop %v2031
        %v2048 = vtanh.pop %v2032
        %v2049 = vtanh.pop %v2033
        %v2050 = vtanh.pop %v2034
        %v2051 = vtanh.pop %v2035
        %v2052 = vtanh.pop %v2036
        %v2053 = vtanh.pop %v2037
        %v2054 = vtanh.pop %v2038
        %v2055 = vtanh.pop %v2039
        %v2056 = vsub.f32 1.0, %v1977
        %v2057 = vsub.f32 1.0, %v1979
        %v2058 = vsub.f32 1.0, %v1981
        %v2059 = vsub.f32 1.0, %v1983
        %v2060 = vsub.f32 1.0, %v1985
        %v2061 = vsub.f32 1.0, %v1987
        %v2062 = vsub.f32 1.0, %v1989
        %v2063 = vsub.f32 1.0, %v1991
        %v2064 = vsub.f32 1.0, %v1993
        %v2065 = vsub.f32 1.0, %v1995
        %v2066 = vsub.f32 1.0, %v1997
        %v2067 = vsub.f32 1.0, %v1999
        %v2068 = vsub.f32 1.0, %v2001
        %v2069 = vsub.f32 1.0, %v2003
        %v2070 = vsub.f32 1.0, %v2005
        %v2071 = vsub.f32 1.0, %v2007
        %v2072 = vmul.f32 %v2056, %v2040
        %v2073 = vmul.f32 %v2057, %v2041
        %v2074 = vmul.f32 %v2058, %v2042
        %v2075 = vmul.f32 %v2059, %v2043
        %v2076 = vmul.f32 %v2060, %v2044
        %v2077 = vmul.f32 %v2061, %v2045
        %v2078 = vmul.f32 %v2062, %v2046
        %v2079 = vmul.f32 %v2063, %v2047
        %v2080 = vmul.f32 %v2064, %v2048
        %v2081 = vmul.f32 %v2065, %v2049
        %v2082 = vmul.f32 %v2066, %v2050
        %v2083 = vmul.f32 %v2067, %v2051
        %v2084 = vmul.f32 %v2068, %v2052
        %v2085 = vmul.f32 %v2069, %v2053
        %v2086 = vmul.f32 %v2070, %v2054
        %v2087 = vmul.f32 %v2071, %v2055
        %v2088 = vmul.f32 %v1977, %v495
        %v2089 = vmul.f32 %v1979, %v496
        %v2090 = vmul.f32 %v1981, %v497
        %v2091 = vmul.f32 %v1983, %v498
        %v2092 = vmul.f32 %v1985, %v499
        %v2093 = vmul.f32 %v1987, %v500
        %v2094 = vmul.f32 %v1989, %v501
        %v2095 = vmul.f32 %v1991, %v502
        %v2096 = vmul.f32 %v1993, %v503
        %v2097 = vmul.f32 %v1995, %v504
        %v2098 = vmul.f32 %v1997, %v505
        %v2099 = vmul.f32 %v1999, %v506
        %v2100 = vmul.f32 %v2001, %v507
        %v2101 = vmul.f32 %v2003, %v508
        %v2102 = vmul.f32 %v2005, %v509
        %v2103 = vmul.f32 %v2007, %v510
        %v2104 = vadd.f32 %v2072, %v2088
        %v2105 = vadd.f32 %v2073, %v2089
        %v2106 = vadd.f32 %v2074, %v2090
        %v2107 = vadd.f32 %v2075, %v2091
        %v2108 = vadd.f32 %v2076, %v2092
        %v2109 = vadd.f32 %v2077, %v2093
        %v2110 = vadd.f32 %v2078, %v2094
        %v2111 = vadd.f32 %v2079, %v2095
        %v2112 = vadd.f32 %v2080, %v2096
        %v2113 = vadd.f32 %v2081, %v2097
        %v2114 = vadd.f32 %v2082, %v2098
        %v2115 = vadd.f32 %v2083, %v2099
        %v2116 = vadd.f32 %v2084, %v2100
        %v2117 = vadd.f32 %v2085, %v2101
        %v2118 = vadd.f32 %v2086, %v2102
        %v2119 = vadd.f32 %v2087, %v2103
        %2120 = vst [vmem:[%s468] sm:$0xff] %v2104
        %2121 = vst [vmem:[%s468 + $0x8] sm:$0xff] %v2105
        %2122 = vst [vmem:[%s468 + $0x10] sm:$0xff] %v2106
        %2123 = vst [vmem:[%s468 + $0x18] sm:$0xff] %v2107
        %2124 = vst [vmem:[%s468 + $0x20] sm:$0xff] %v2108
        %2125 = vst [vmem:[%s468 + $0x28] sm:$0xff] %v2109
        %2126 = vst [vmem:[%s468 + $0x30] sm:$0xff] %v2110
        %2127 = vst [vmem:[%s468 + $0x38] sm:$0xff] %v2111
        %2128 = vst [vmem:[%s468 + $0x40] sm:$0xff] %v2112
        %2129 = vst [vmem:[%s468 + $0x48] sm:$0xff] %v2113
        %2130 = vst [vmem:[%s468 + $0x50] sm:$0xff] %v2114
        %2131 = vst [vmem:[%s468 + $0x58] sm:$0xff] %v2115
        %2132 = vst [vmem:[%s468 + $0x60] sm:$0xff] %v2116
        %2133 = vst [vmem:[%s468 + $0x68] sm:$0xff] %v2117
        %2134 = vst [vmem:[%s468 + $0x70] sm:$0xff] %v2118
        %2135 = vst [vmem:[%s468 + $0x78] sm:$0xff] %v2119
        %v2136 = vpack.c.bf16 %v2105, %v2104
        %v2137 = vpack.c.bf16 %v2107, %v2106
        %v2138 = vpack.c.bf16 %v2109, %v2108
        %v2139 = vpack.c.bf16 %v2111, %v2110
        %v2140 = vpack.c.bf16 %v2113, %v2112
        %v2141 = vpack.c.bf16 %v2115, %v2114
        %v2142 = vpack.c.bf16 %v2117, %v2116
        %v2143 = vpack.c.bf16 %v2119, %v2118
        %v2144 = vld [vmem:[#allocation7] sm:$0xf]
        %v2145 = vld [vmem:[#allocation7 + $0x4] sm:$0xf]
        %v2146 = vld [vmem:[#allocation7 + $0x8] sm:$0xf]
        %v2147 = vld [vmem:[#allocation7 + $0xc] sm:$0xf]
        %v2148 = vld [vmem:[#allocation7 + $0x10] sm:$0xf]
        %v2149 = vld [vmem:[#allocation7 + $0x14] sm:$0xf]
        %v2150 = vld [vmem:[#allocation7 + $0x18] sm:$0xf]
        %v2151 = vld [vmem:[#allocation7 + $0x1c] sm:$0xf]
        %v2152 = vld [vmem:[#allocation7 + $0x20] sm:$0xf]
        %v2153 = vld [vmem:[#allocation7 + $0x24] sm:$0xf]
        %v2154 = vld [vmem:[#allocation7 + $0x28] sm:$0xf]
        %v2155 = vld [vmem:[#allocation7 + $0x2c] sm:$0xf]
        %v2156 = vld [vmem:[#allocation7 + $0x30] sm:$0xf]
        %v2157 = vld [vmem:[#allocation7 + $0x34] sm:$0xf]
        %v2158 = vld [vmem:[#allocation7 + $0x38] sm:$0xf]
        %v2159 = vld [vmem:[#allocation7 + $0x3c] sm:$0xf]
        %v2160 = vld [vmem:[%s9] sm:$0x1]
        %v2162 = vlaneseq
        %v2163 = vshrl.u32 %v2162, 7
        %v2164 = vsub.s32 0, %v2163
        %v2165 = vrot.slane %v2160, %v2164
        %v2183 = vunpack.c.l.b16 %v2144
        %v2184 = vunpack.c.l.b16 %v2145
        %v2185 = vunpack.c.l.b16 %v2146
        %v2186 = vunpack.c.l.b16 %v2147
        %v2187 = vunpack.c.l.b16 %v2148
        %v2188 = vunpack.c.l.b16 %v2149
        %v2189 = vunpack.c.l.b16 %v2150
        %v2190 = vunpack.c.l.b16 %v2151
        %v2191 = vunpack.c.l.b16 %v2152
        %v2192 = vunpack.c.l.b16 %v2153
        %v2193 = vunpack.c.l.b16 %v2154
        %v2194 = vunpack.c.l.b16 %v2155
        %v2195 = vunpack.c.l.b16 %v2156
        %v2196 = vunpack.c.l.b16 %v2157
        %v2197 = vunpack.c.l.b16 %v2158
        %v2198 = vunpack.c.l.b16 %v2159
        %v2199 = vpack.c.b16 %v2184, %v2183
        %v2200 = vpack.c.b16 %v2186, %v2185
        %v2201 = vpack.c.b16 %v2188, %v2187
        %v2202 = vpack.c.b16 %v2190, %v2189
        %v2203 = vpack.c.b16 %v2192, %v2191
        %v2204 = vpack.c.b16 %v2194, %v2193
        %v2205 = vpack.c.b16 %v2196, %v2195
        %v2206 = vpack.c.b16 %v2198, %v2197
        %2215 = vmatprep.subr.bf16.mxu0 0
        %2216 = vmatpush1.bf16.msra.mxu0 %v2206
        %2217 = vmatprep.subr.bf16.mxu0 0
        %2218 = vmatpush1.bf16.msra.mxu0 %v2205
        %2219 = vmatprep.subr.bf16.mxu0 0
        %2220 = vmatpush1.bf16.msra.mxu0 %v2204
        %2221 = vmatprep.subr.bf16.mxu0 0
        %2222 = vmatpush1.bf16.msra.mxu0 %v2203
        %2223 = vmatprep.subr.bf16.mxu0 0
        %2224 = vmatpush1.bf16.msra.mxu0 %v2202
        %2225 = vmatprep.subr.bf16.mxu0 0
        %2226 = vmatpush1.bf16.msra.mxu0 %v2201
        %2227 = vmatprep.subr.bf16.mxu0 0
        %2228 = vmatpush1.bf16.msra.mxu0 %v2200
        %2229 = vmatprep.subr.bf16.mxu0 0
        %2230 = vmatpush1.bf16.msra.mxu0 %v2199
        %2231 = vmatprep.subr.bf16.mxu0 0
        %2232 = vmatpush2.bf16.msra.mxu0 0
        %2233 = vmatprep.subr.bf16.mxu0 0
        %2234 = vmatpush2.bf16.msra.mxu0 0
        %2235 = vmatprep.subr.bf16.mxu0 0
        %2236 = vmatpush2.bf16.msra.mxu0 0
        %2237 = vmatprep.subr.bf16.mxu0 0
        %2238 = vmatpush2.bf16.msra.mxu0 0
        %2239 = vmatprep.subr.bf16.mxu0 0
        %2240 = vmatpush2.bf16.msra.mxu0 0
        %2241 = vmatprep.subr.bf16.mxu0 0
        %2242 = vmatpush2.bf16.msra.mxu0 0
        %2243 = vmatprep.subr.bf16.mxu0 0
        %2244 = vmatpush2.bf16.msra.mxu0 0
        %2245 = vmatprep.subr.bf16.mxu0 0
        %2246 = vmatpush2.bf16.msra.mxu0 0
        %2247 = vmatprep.mubr.bf16.mxu0 0
        %2248 = vmatmul.mubr.bf16.gmra.mxu0 %v2136
        %v2249 = vpop.f32.mrf.mxu0
        %v2250 = vadd.f32 %v2165, %v2249
        %v2251 = vpop.f32.mrf.mxu0
        %v2252 = vpop.f32.mrf.mxu0
        %v2253 = vadd.f32 %v2165, %v2252
        %v2254 = vpop.f32.mrf.mxu0
        %2255 = vmatprep.mubr.bf16.mxu0 0
        %2256 = vmatmul.mubr.bf16.gmra.mxu0 %v2137
        %v2257 = vpop.f32.mrf.mxu0
        %v2258 = vadd.f32 %v2165, %v2257
        %v2259 = vpop.f32.mrf.mxu0
        %v2260 = vpop.f32.mrf.mxu0
        %v2261 = vadd.f32 %v2165, %v2260
        %v2262 = vpop.f32.mrf.mxu0
        %2263 = vmatprep.mubr.bf16.mxu0 0
        %2264 = vmatmul.mubr.bf16.gmra.mxu0 %v2138
        %v2265 = vpop.f32.mrf.mxu0
        %v2266 = vadd.f32 %v2165, %v2265
        %v2267 = vpop.f32.mrf.mxu0
        %v2268 = vpop.f32.mrf.mxu0
        %v2269 = vadd.f32 %v2165, %v2268
        %v2270 = vpop.f32.mrf.mxu0
        %2271 = vmatprep.mubr.bf16.mxu0 0
        %2272 = vmatmul.mubr.bf16.gmra.mxu0 %v2139
        %v2273 = vpop.f32.mrf.mxu0
        %v2274 = vadd.f32 %v2165, %v2273
        %v2275 = vpop.f32.mrf.mxu0
        %v2276 = vpop.f32.mrf.mxu0
        %v2277 = vadd.f32 %v2165, %v2276
        %v2278 = vpop.f32.mrf.mxu0
        %2279 = vmatprep.mubr.bf16.mxu0 0
        %2280 = vmatmul.mubr.bf16.gmra.mxu0 %v2140
        %v2281 = vpop.f32.mrf.mxu0
        %v2282 = vadd.f32 %v2165, %v2281
        %v2283 = vpop.f32.mrf.mxu0
        %v2284 = vpop.f32.mrf.mxu0
        %v2285 = vadd.f32 %v2165, %v2284
        %v2286 = vpop.f32.mrf.mxu0
        %2287 = vmatprep.mubr.bf16.mxu0 0
        %2288 = vmatmul.mubr.bf16.gmra.mxu0 %v2141
        %v2289 = vpop.f32.mrf.mxu0
        %v2290 = vadd.f32 %v2165, %v2289
        %v2291 = vpop.f32.mrf.mxu0
        %v2292 = vpop.f32.mrf.mxu0
        %v2293 = vadd.f32 %v2165, %v2292
        %v2294 = vpop.f32.mrf.mxu0
        %2295 = vmatprep.mubr.bf16.mxu0 0
        %2296 = vmatmul.mubr.bf16.gmra.mxu0 %v2142
        %v2297 = vpop.f32.mrf.mxu0
        %v2298 = vadd.f32 %v2165, %v2297
        %v2299 = vpop.f32.mrf.mxu0
        %v2300 = vpop.f32.mrf.mxu0
        %v2301 = vadd.f32 %v2165, %v2300
        %v2302 = vpop.f32.mrf.mxu0
        %2303 = vmatprep.mubr.bf16.mxu0 0
        %2304 = vmatmul.mubr.bf16.gmra.mxu0 %v2143
        %v2305 = vpop.f32.mrf.mxu0
        %v2306 = vadd.f32 %v2165, %v2305
        %v2307 = vpop.f32.mrf.mxu0
        %v2308 = vpop.f32.mrf.mxu0
        %v2309 = vadd.f32 %v2165, %v2308
        %v2310 = vpop.f32.mrf.mxu0
        %2311 = vdwg.mxu0
        %vm2312 = vcmp.gt.f32.partialorder %v2250, 0.0
        %vm2313 = vcmp.gt.f32.partialorder %v2253, 0.0
        %vm2314 = vcmp.gt.f32.partialorder %v2258, 0.0
        %vm2315 = vcmp.gt.f32.partialorder %v2261, 0.0
        %vm2316 = vcmp.gt.f32.partialorder %v2266, 0.0
        %vm2317 = vcmp.gt.f32.partialorder %v2269, 0.0
        %vm2318 = vcmp.gt.f32.partialorder %v2274, 0.0
        %vm2319 = vcmp.gt.f32.partialorder %v2277, 0.0
        %vm2320 = vcmp.gt.f32.partialorder %v2282, 0.0
        %vm2321 = vcmp.gt.f32.partialorder %v2285, 0.0
        %vm2322 = vcmp.gt.f32.partialorder %v2290, 0.0
        %vm2323 = vcmp.gt.f32.partialorder %v2293, 0.0
        %vm2324 = vcmp.gt.f32.partialorder %v2298, 0.0
        %vm2325 = vcmp.gt.f32.partialorder %v2301, 0.0
        %vm2326 = vcmp.gt.f32.partialorder %v2306, 0.0
        %vm2327 = vcmp.gt.f32.partialorder %v2309, 0.0
        %v2328 = vmul.f32 %v2250, 0.01
        %v2329 = vmul.f32 %v2253, 0.01
        %v2330 = vmul.f32 %v2258, 0.01
        %v2331 = vmul.f32 %v2261, 0.01
        %v2332 = vmul.f32 %v2266, 0.01
        %v2333 = vmul.f32 %v2269, 0.01
        %v2334 = vmul.f32 %v2274, 0.01
        %v2335 = vmul.f32 %v2277, 0.01
        %v2336 = vmul.f32 %v2282, 0.01
        %v2337 = vmul.f32 %v2285, 0.01
        %v2338 = vmul.f32 %v2290, 0.01
        %v2339 = vmul.f32 %v2293, 0.01
        %v2340 = vmul.f32 %v2298, 0.01
        %v2341 = vmul.f32 %v2301, 0.01
        %v2342 = vmul.f32 %v2306, 0.01
        %v2343 = vmul.f32 %v2309, 0.01
        %v2344 = vsel %vm2312, %v2250, %v2328
        %v2345 = vsel %vm2313, %v2253, %v2329
        %v2346 = vsel %vm2314, %v2258, %v2330
        %v2347 = vsel %vm2315, %v2261, %v2331
        %v2348 = vsel %vm2316, %v2266, %v2332
        %v2349 = vsel %vm2317, %v2269, %v2333
        %v2350 = vsel %vm2318, %v2274, %v2334
        %v2351 = vsel %vm2319, %v2277, %v2335
        %v2352 = vsel %vm2320, %v2282, %v2336
        %v2353 = vsel %vm2321, %v2285, %v2337
        %v2354 = vsel %vm2322, %v2290, %v2338
        %v2355 = vsel %vm2323, %v2293, %v2339
        %v2356 = vsel %vm2324, %v2298, %v2340
        %v2357 = vsel %vm2325, %v2301, %v2341
        %v2358 = vsel %vm2326, %v2306, %v2342
        %v2359 = vsel %vm2327, %v2309, %v2343
        %v2360 = vpack.c.bf16 %v2345, %v2344
        %v2361 = vpack.c.bf16 %v2347, %v2346
        %v2362 = vpack.c.bf16 %v2349, %v2348
        %v2363 = vpack.c.bf16 %v2351, %v2350
        %v2364 = vpack.c.bf16 %v2353, %v2352
        %v2365 = vpack.c.bf16 %v2355, %v2354
        %v2366 = vpack.c.bf16 %v2357, %v2356
        %v2367 = vpack.c.bf16 %v2359, %v2358
        %v2376 = vunpack.c.l.b16 %v2360
        %v2377 = vunpack.c.h.b16 %v2360
        %v2378 = vunpack.c.l.b16 %v2361
        %v2379 = vunpack.c.h.b16 %v2361
        %v2380 = vunpack.c.l.b16 %v2362
        %v2381 = vunpack.c.h.b16 %v2362
        %v2382 = vunpack.c.l.b16 %v2363
        %v2383 = vunpack.c.h.b16 %v2363
        %v2384 = vunpack.c.l.b16 %v2364
        %v2385 = vunpack.c.h.b16 %v2364
        %v2386 = vunpack.c.l.b16 %v2365
        %v2387 = vunpack.c.h.b16 %v2365
        %v2388 = vunpack.c.l.b16 %v2366
        %v2389 = vunpack.c.h.b16 %v2366
        %v2390 = vunpack.c.l.b16 %v2367
        %v2391 = vunpack.c.h.b16 %v2367
        %v2392 = vpack.c.b16 %v2376, %v2376
        %v2393 = vpack.c.b16 %v2377, %v2377
        %v2394 = vpack.c.b16 %v2378, %v2378
        %v2395 = vpack.c.b16 %v2379, %v2379
        %v2396 = vpack.c.b16 %v2380, %v2380
        %v2397 = vpack.c.b16 %v2381, %v2381
        %v2398 = vpack.c.b16 %v2382, %v2382
        %v2399 = vpack.c.b16 %v2383, %v2383
        %v2400 = vpack.c.b16 %v2384, %v2384
        %v2401 = vpack.c.b16 %v2385, %v2385
        %v2402 = vpack.c.b16 %v2386, %v2386
        %v2403 = vpack.c.b16 %v2387, %v2387
        %v2404 = vpack.c.b16 %v2388, %v2388
        %v2405 = vpack.c.b16 %v2389, %v2389
        %v2406 = vpack.c.b16 %v2390, %v2390
        %v2407 = vpack.c.b16 %v2391, %v2391
        %2424 = vst [vmem:[%s462] sm:$0xf] %v2392
        %2425 = vst [vmem:[%s462 + $0x4] sm:$0xf] %v2393
        %2426 = vst [vmem:[%s462 + $0x8] sm:$0xf] %v2394
        %2427 = vst [vmem:[%s462 + $0xc] sm:$0xf] %v2395
        %2428 = vst [vmem:[%s462 + $0x10] sm:$0xf] %v2396
        %2429 = vst [vmem:[%s462 + $0x14] sm:$0xf] %v2397
        %2430 = vst [vmem:[%s462 + $0x18] sm:$0xf] %v2398
        %2431 = vst [vmem:[%s462 + $0x1c] sm:$0xf] %v2399
        %2432 = vst [vmem:[%s462 + $0x20] sm:$0xf] %v2400
        %2433 = vst [vmem:[%s462 + $0x24] sm:$0xf] %v2401
        %2434 = vst [vmem:[%s462 + $0x28] sm:$0xf] %v2402
        %2435 = vst [vmem:[%s462 + $0x2c] sm:$0xf] %v2403
        %2436 = vst [vmem:[%s462 + $0x30] sm:$0xf] %v2404
        %2437 = vst [vmem:[%s462 + $0x34] sm:$0xf] %v2405
        %2438 = vst [vmem:[%s462 + $0x38] sm:$0xf] %v2406
        %2439 = vst [vmem:[%s462 + $0x3c] sm:$0xf] %v2407
        %s2440 = smul.u32 16, %s25
        %p2441 = scmp.lt.s32.totalorder %s2440, 31
        %s2442 = scalar_select %p2441, %s2440, 31
        %s2443 = smul.addr %s2442, 4
        %s2444 = scalar_lea.vmem %s10, %s2443
        %s2445 = smul.u32 16, %s25
        %p2446 = scmp.lt.s32.totalorder %s2445, 31
        %s2447 = scalar_select %p2446, %s2445, 31
        %s2448 = smul.addr %s2447, 8
        %s2449 = scalar_lea.vmem %s11, %s2448
        // Predicated region
        $region73: #{gru_policy_forward.1} parent=59 // pred_check
          %p2450 = pneg %p263
        $region74: #{gru_policy_forward.1} parent=59 // pred_check_branch
          %2452 = sbr.rel (%p2450) target = $region76
        $region75: #{gru_policy_forward.1} parent=59 // pred_region
          %s2453 = smul.u32 16, %s25
        $region76: #{gru_policy_forward.1} parent=59 // pred_fallthru
          _
        // Predicated region
        $region77: #{gru_policy_forward.1} parent=59 // pred_check
          %p2454 = pneg %p289
        $region78: #{gru_policy_forward.1} parent=59 // pred_check_branch
          %2456 = sbr.rel (%p2454) target = $region80
        $region79: #{gru_policy_forward.1} parent=59 // pred_region
          %s2457 = smul.u32 16, %s25
        $region80: #{gru_policy_forward.1} parent=59 // pred_fallthru
          _
      $region60: #{gru_policy_forward.1} parent=5 // pred_fallthru
        _
      %p2458 = scmp.le.s32.totalorder 2, %s20
      // Predicated region
      $region81: #{gru_policy_forward.1} parent=5 // pred_check
        %p2459 = pneg %p2458
      $region82: #{gru_policy_forward.1} parent=5 // pred_check_branch
        %2461 = sbr.rel (%p2459) target = $region84
      $region83: #{gru_policy_forward.1} parent=5 // pred_region
        %s2462 = ssub.s32 %s20, 2
        // Predicated region
        $region85: #{gru_policy_forward.1} parent=83 // pred_check
          %p2463 = pneg %p269
        $region86: #{gru_policy_forward.1} parent=83 // pred_check_branch
          %2465 = sbr.rel (%p2463) target = $region88
        $region87: #{gru_policy_forward.1} parent=83 // pred_region
          %s2466 = smul.u32 16, %s26
          %p2467 = scmp.lt.s32.totalorder %s2466, 31
          %s2468 = scalar_select %p2467, %s2466, 31
          %s2469 = smul.addr %s2468, 4
          %s2470 = scalar_lea.vmem %s10, %s2469
        $region88: #{gru_policy_forward.1} parent=83 // pred_fallthru
          _
        // Predicated region
        $region89: #{gru_policy_forward.1} parent=83 // pred_check
          %p2471 = pneg %p295
        $region90: #{gru_policy_forward.1} parent=83 // pred_check_branch
          %2473 = sbr.rel (%p2471) target = $region92
        $region91: #{gru_policy_forward.1} parent=83 // pred_region
          %s2474 = smul.u32 16, %s26
          %p2475 = scmp.lt.s32.totalorder %s2474, 31
          %s2476 = scalar_select %p2475, %s2474, 31
          %s2477 = smul.addr %s2476, 8
          %s2478 = scalar_lea.vmem %s11, %s2477
        $region92: #{gru_policy_forward.1} parent=83 // pred_fallthru
          _
      $region84: #{gru_policy_forward.1} parent=5 // pred_fallthru
        _
    $region6: #{gru_policy_forward.1} parent=1 // loop_footer
      %s24 = sadd.s32 1, %s20
    $region7: #{gru_policy_forward.1} parent=1 // loop_footer_branch
      %19 = sbr.rel target = $region3
    $region8: #{gru_policy_forward.1} parent=1 // loop_exit
      _
    %2479 = vsyncpa [#allocation4], 1
    %s2480 = scalar_lea.sflag [#allocation4], 1
    %2481 = vsyncpa %s2480, 1
    %2482 = vsyncpa [#allocation6], 1

</llo_original>
